<compile_context>
chip_gen: v5e
topology: v5e:2x2
jax: 0.10.0
libtpu: 0.0.40
codegen_flags: <defaults>
</compile_context>

<pallas_src>
import functools

import numpy as np
import jax
import jax.numpy as jnp
from jax.experimental import pallas as pl
from jax.experimental.pallas import tpu as pltpu

_MARGIN = 128  # zero margin (lane-tile aligned) around the flattened spatial axis


# ---------------------------------------------------------------------------
# Fused Pallas kernel (one batch element per grid step)
# ---------------------------------------------------------------------------

def _residual_kernel(x_ref, bn1s_ref, bn1b_ref, w1_ref, b1_ref,
                     w2_ref, b2_ref, w3_ref, b3_ref, wsk_ref, bsk_ref,
                     dxmask_ref, out_ref, ebuf_ref, *, W):
    """All activations are (C, H*W) with H*W on the lane axis."""
    x = x_ref[0]                                             # (Cin, HW)
    HW = x.shape[1]

    # skip_layer: 1x1 conv (+bias), no relu
    skip = jnp.dot(wsk_ref[...], x, preferred_element_type=jnp.float32)
    skip = skip + bsk_ref[...]                               # (Cout, HW)

    # bn1 + relu (per-input-channel scale/shift)
    t = jnp.maximum(x * bn1s_ref[...] + bn1b_ref[...], 0.0)

    # conv1 (1x1, bn2 pre-folded) + relu
    t2 = jnp.dot(w1_ref[...], t, preferred_element_type=jnp.float32) + b1_ref[...]
    t2 = jnp.maximum(t2, 0.0)                                # (Cmid, HW)
    Cmid = t2.shape[0]

    # conv2 (3x3, bn3 pre-folded): place t2 in a zero-margined scratch so each
    # tap is a flat shifted window read; per-dx masks kill row-wrap columns.
    ebuf_ref[...] = jnp.zeros_like(ebuf_ref)                 # keep margins zero
    ebuf_ref[:, _MARGIN:_MARGIN + HW] = t2                   # lane-tile aligned store

    acc = jnp.zeros((Cmid, HW), jnp.float32)
    for dy in (-1, 0, 1):
        for dx in (-1, 0, 1):
            tap = (dy + 1) * 3 + (dx + 1)
            start = _MARGIN + dy * W + dx
            win = ebuf_ref[:, start:start + HW]              # (Cmid, HW)
            win = win * dxmask_ref[dx + 1]                   # (1, HW) broadcast
            acc = acc + jnp.dot(w2_ref[tap], win,
                                preferred_element_type=jnp.float32)
    t3 = jnp.maximum(acc + b2_ref[...], 0.0)                 # (Cmid, HW)

    # conv3 (1x1) + residual add; full-width lane-dense store
    h3 = jnp.dot(w3_ref[...], t3, preferred_element_type=jnp.float32) + b3_ref[...]
    out_ref[0] = h3 + skip


# ---------------------------------------------------------------------------
# Wrapper
# ---------------------------------------------------------------------------

def _fold_bn(gamma, beta, mean, var, eps=1e-5):
    scale = gamma / jnp.sqrt(var + eps)
    shift = beta - mean * scale
    return scale.astype(jnp.float32), shift.astype(jnp.float32)


@jax.jit
def residual_forward(x_nchw, params):
    """Residual block forward. Input/output are NCHW (PyTorch convention)."""
    x = x_nchw.astype(jnp.float32)
    N, Cin, H, W = x.shape
    HW = H * W
    Cmid = params["w1"].shape[1]
    Cout = params["w3"].shape[1]

    bn1s, bn1b = _fold_bn(*params["bn1"])
    bn2s, bn2b = _fold_bn(*params["bn2"])
    bn3s, bn3b = _fold_bn(*params["bn3"])

    # Channel-major weights; fold bn2 into conv1 and bn3 into conv2 (exact).
    w1 = params["w1"].T * bn2s[:, None]                       # (Cmid, Cin)
    b1 = (params["b1"] * bn2s + bn2b).reshape(Cmid, 1)
    w2 = jnp.transpose(params["w2"], (0, 1, 3, 2)).reshape(9, Cmid, Cmid)
    w2 = w2 * bn3s[None, :, None]                             # (9, Cmid_out, Cmid_in)
    b2 = (params["b2"] * bn3s + bn3b).reshape(Cmid, 1)
    w3 = params["w3"].T                                       # (Cout, Cmid)
    b3 = params["b3"].reshape(Cout, 1)
    wsk = params["wsk"].T                                     # (Cout, Cin)
    bsk = params["bsk"].reshape(Cout, 1)
    bn1s = bn1s.reshape(Cin, 1)
    bn1b = bn1b.reshape(Cin, 1)

    # Per-dx masks: zero the flattened columns whose 3x3 tap would wrap rows.
    w_of_p = np.tile(np.arange(W), H)
    dxmask = np.ones((3, 1, HW), np.float32)
    dxmask[0, 0, :] = (w_of_p >= 1)           # dx = -1 needs w-1 >= 0
    dxmask[2, 0, :] = (w_of_p <= W - 2)       # dx = +1 needs w+1 <= W-1
    dxmask = jnp.asarray(dxmask)

    x_flat = x.reshape(N, Cin, HW)            # NCHW already spatial-last: free

    def _full(shape):
        return pl.BlockSpec(shape, lambda b: (0,) * len(shape))

    kernel = functools.partial(_residual_kernel, W=W)

    out = pl.pallas_call(
        kernel,
        out_shape=jax.ShapeDtypeStruct((N, Cout, HW), jnp.float32),
        grid=(N,),
        in_specs=[
            pl.BlockSpec((1, Cin, HW), lambda b: (b, 0, 0)),
            _full((Cin, 1)), _full((Cin, 1)),
            _full((Cmid, Cin)), _full((Cmid, 1)),
            _full((9, Cmid, Cmid)), _full((Cmid, 1)),
            _full((Cout, Cmid)), _full((Cout, 1)),
            _full((Cout, Cin)), _full((Cout, 1)),
            _full((3, 1, HW)),
        ],
        out_specs=pl.BlockSpec((1, Cout, HW), lambda b: (b, 0, 0)),
        scratch_shapes=[pltpu.VMEM((Cmid, HW + 2 * _MARGIN), jnp.float32)],
        compiler_params=pltpu.CompilerParams(
            dimension_semantics=("parallel",)),
    )(x_flat, bn1s, bn1b, w1, b1, w2, b2, w3, b3, wsk, bsk, dxmask)

    return out.reshape(N, Cout, H, W)


# ---------------------------------------------------------------------------
# Pure-JAX reference (for correctness check)
# ---------------------------------------------------------------------------

def _conv_nhwc(x, w_hwio, b, pad):
    y = jax.lax.conv_general_dilated(
        x, w_hwio, window_strides=(1, 1),
        padding=((pad, pad), (pad, pad)),
        dimension_numbers=("NHWC", "HWIO", "NHWC"))
    return y + b


def residual_reference(x_nchw, params):
    x = jnp.transpose(x_nchw, (0, 2, 3, 1)).astype(jnp.float32)

    def bn(v, p):
        s, t = _fold_bn(*p)
        return v * s + t

    res = _conv_nhwc(x, params["wsk"][None, None], params["bsk"], 0)
    o = jnp.maximum(bn(x, params["bn1"]), 0.0)
    o = _conv_nhwc(o, params["w1"][None, None], params["b1"], 0)
    o = jnp.maximum(bn(o, params["bn2"]), 0.0)
    o = _conv_nhwc(o, params["w2"], params["b2"], 1)
    o = jnp.maximum(bn(o, params["bn3"]), 0.0)
    o = _conv_nhwc(o, params["w3"][None, None], params["b3"], 0)
    o = o + res
    return jnp.transpose(o, (0, 3, 1, 2))


# ---------------------------------------------------------------------------
# Main
# ---------------------------------------------------------------------------

if __name__ == "__main__":
    # Shapes consistent with Residual(inp_dim=4, out_dim=8)
    N, Cin, H, W = 2, 4, 16, 16
    Cout = 8
    Cmid = Cout // 2

    key = jax.random.PRNGKey(0)
    ks = jax.random.split(key, 16)

    def bn_params(k, c):
        k1, k2, k3, k4 = jax.random.split(k, 4)
        gamma = 1.0 + 0.1 * jax.random.normal(k1, (c,), jnp.float32)
        beta = 0.1 * jax.random.normal(k2, (c,), jnp.float32)
        mean = 0.1 * jax.random.normal(k3, (c,), jnp.float32)
        var = 0.5 + jax.random.uniform(k4, (c,), jnp.float32)
        return (gamma, beta, mean, var)

    params = {
        "bn1": bn_params(ks[0], Cin),
        "w1": 0.1 * jax.random.normal(ks[1], (Cin, Cmid), jnp.float32),        # 1x1 conv (I,O)
        "b1": 0.1 * jax.random.normal(ks[2], (Cmid,), jnp.float32),
        "bn2": bn_params(ks[3], Cmid),
        "w2": 0.1 * jax.random.normal(ks[4], (3, 3, Cmid, Cmid), jnp.float32),  # 3x3 HWIO
        "b2": 0.1 * jax.random.normal(ks[5], (Cmid,), jnp.float32),
        "bn3": bn_params(ks[6], Cmid),
        "w3": 0.1 * jax.random.normal(ks[7], (Cmid, Cout), jnp.float32),        # 1x1 conv (I,O)
        "b3": 0.1 * jax.random.normal(ks[8], (Cout,), jnp.float32),
        "wsk": 0.1 * jax.random.normal(ks[9], (Cin, Cout), jnp.float32),        # skip 1x1 (I,O)
        "bsk": 0.1 * jax.random.normal(ks[10], (Cout,), jnp.float32),
    }

    x = jax.random.normal(ks[11], (N, Cin, H, W), jnp.float32)   # NCHW like PyTorch

    out = residual_forward(x, params)
    out = jax.block_until_ready(out)

    ref = residual_reference(x, params)
    assert out.shape == (N, Cout, H, W), out.shape
    err = float(jnp.max(jnp.abs(out - ref)))
    assert jnp.allclose(out, ref, atol=2e-4, rtol=2e-4), err

    print("KERNEL_OK")
</pallas_src>

<mosaic_0001>
module attributes {stable_mosaic.version = 11 : i64} {
  func.func @_residual_kernel(%arg0: i32, %arg1: memref<1x4x256xf32, #tpu.memory_space<vmem>>, %arg2: memref<4x1xf32, #tpu.memory_space<vmem>>, %arg3: memref<4x1xf32, #tpu.memory_space<vmem>>, %arg4: memref<4x4xf32, #tpu.memory_space<vmem>>, %arg5: memref<4x1xf32, #tpu.memory_space<vmem>>, %arg6: memref<9x4x4xf32, #tpu.memory_space<vmem>>, %arg7: memref<4x1xf32, #tpu.memory_space<vmem>>, %arg8: memref<8x4xf32, #tpu.memory_space<vmem>>, %arg9: memref<8x1xf32, #tpu.memory_space<vmem>>, %arg10: memref<8x4xf32, #tpu.memory_space<vmem>>, %arg11: memref<8x1xf32, #tpu.memory_space<vmem>>, %arg12: memref<3x1x256xf32, #tpu.memory_space<vmem>>, %arg13: memref<1x8x256xf32, #tpu.memory_space<vmem>>, %arg14: memref<4x512xf32, #tpu.memory_space<vmem>>) attributes {dimension_semantics = [#tpu.dimension_semantics<parallel>], iteration_bounds = array<i64: 2>, scalar_prefetch = 0 : i64, scratch_operands = 1 : i64, tpu.core_type = #tpu.core_type<tc>, window_params = [{transform_indices = @transform_0, window_bounds = array<i64: 1, 4, 256>}, {pipeline_mode = #tpu.pipeline_mode<synchronous>, transform_indices = @transform_1, window_bounds = array<i64: 4, 1>}, {pipeline_mode = #tpu.pipeline_mode<synchronous>, transform_indices = @transform_2, window_bounds = array<i64: 4, 1>}, {pipeline_mode = #tpu.pipeline_mode<synchronous>, transform_indices = @transform_3, window_bounds = array<i64: 4, 4>}, {pipeline_mode = #tpu.pipeline_mode<synchronous>, transform_indices = @transform_4, window_bounds = array<i64: 4, 1>}, {pipeline_mode = #tpu.pipeline_mode<synchronous>, transform_indices = @transform_5, window_bounds = array<i64: 9, 4, 4>}, {pipeline_mode = #tpu.pipeline_mode<synchronous>, transform_indices = @transform_6, window_bounds = array<i64: 4, 1>}, {pipeline_mode = #tpu.pipeline_mode<synchronous>, transform_indices = @transform_7, window_bounds = array<i64: 8, 4>}, {pipeline_mode = #tpu.pipeline_mode<synchronous>, transform_indices = @transform_8, window_bounds = array<i64: 8, 1>}, {pipeline_mode = #tpu.pipeline_mode<synchronous>, transform_indices = @transform_9, window_bounds = array<i64: 8, 4>}, {pipeline_mode = #tpu.pipeline_mode<synchronous>, transform_indices = @transform_10, window_bounds = array<i64: 8, 1>}, {pipeline_mode = #tpu.pipeline_mode<synchronous>, transform_indices = @transform_11, window_bounds = array<i64: 3, 1, 256>}, {transform_indices = @transform_12, window_bounds = array<i64: 1, 8, 256>}]} {
    %c0 = arith.constant 0 : index
    %c0_0 = arith.constant 0 : index
    %c0_1 = arith.constant 0 : index
    %0 = vector.load %arg1[%c0, %c0_0, %c0_1] : memref<1x4x256xf32, #tpu.memory_space<vmem>>, vector<1x4x256xf32>
    %1 = vector.shape_cast %0 : vector<1x4x256xf32> to vector<4x256xf32>
    %c0_2 = arith.constant 0 : index
    %c0_3 = arith.constant 0 : index
    %2 = vector.load %arg10[%c0_2, %c0_3] : memref<8x4xf32, #tpu.memory_space<vmem>>, vector<8x4xf32>
    %cst = arith.constant dense<0.000000e+00> : vector<8x256xf32>
    %3 = tpu.matmul %2, %1, %cst {dimension_numbers = #tpu.dot_dimension_numbers<[1], [0], [0], [1], [0, 0, 1, 1], [], []>} : vector<8x4xf32>, vector<4x256xf32>, vector<8x256xf32> -> vector<8x256xf32>
    %c0_4 = arith.constant 0 : index
    %c0_5 = arith.constant 0 : index
    %4 = vector.load %arg11[%c0_4, %c0_5] : memref<8x1xf32, #tpu.memory_space<vmem>>, vector<8x1xf32>
    %5 = vector.broadcast %4 : vector<8x1xf32> to vector<8x256xf32>
    %6 = arith.addf %3, %5 : vector<8x256xf32>
    %c0_6 = arith.constant 0 : index
    %c0_7 = arith.constant 0 : index
    %7 = vector.load %arg2[%c0_6, %c0_7] : memref<4x1xf32, #tpu.memory_space<vmem>>, vector<4x1xf32>
    %8 = vector.broadcast %7 : vector<4x1xf32> to vector<4x256xf32>
    %9 = arith.mulf %1, %8 : vector<4x256xf32>
    %c0_8 = arith.constant 0 : index
    %c0_9 = arith.constant 0 : index
    %10 = vector.load %arg3[%c0_8, %c0_9] : memref<4x1xf32, #tpu.memory_space<vmem>>, vector<4x1xf32>
    %11 = vector.broadcast %10 : vector<4x1xf32> to vector<4x256xf32>
    %12 = arith.addf %9, %11 : vector<4x256xf32>
    %cst_10 = arith.constant 0.000000e+00 : f32
    %13 = vector.broadcast %cst_10 : f32 to vector<4x256xf32>
    %14 = arith.maximumf %12, %13 : vector<4x256xf32>
    %c0_11 = arith.constant 0 : index
    %c0_12 = arith.constant 0 : index
    %15 = vector.load %arg4[%c0_11, %c0_12] : memref<4x4xf32, #tpu.memory_space<vmem>>, vector<4x4xf32>
    %cst_13 = arith.constant dense<0.000000e+00> : vector<4x256xf32>
    %16 = tpu.matmul %15, %14, %cst_13 {dimension_numbers = #tpu.dot_dimension_numbers<[1], [0], [0], [1], [0, 0, 1, 1], [], []>} : vector<4x4xf32>, vector<4x256xf32>, vector<4x256xf32> -> vector<4x256xf32>
    %c0_14 = arith.constant 0 : index
    %c0_15 = arith.constant 0 : index
    %17 = vector.load %arg5[%c0_14, %c0_15] : memref<4x1xf32, #tpu.memory_space<vmem>>, vector<4x1xf32>
    %18 = vector.broadcast %17 : vector<4x1xf32> to vector<4x256xf32>
    %19 = arith.addf %16, %18 : vector<4x256xf32>
    %cst_16 = arith.constant 0.000000e+00 : f32
    %20 = vector.broadcast %cst_16 : f32 to vector<4x256xf32>
    %21 = arith.maximumf %19, %20 : vector<4x256xf32>
    %cst_17 = arith.constant 0.000000e+00 : f32
    %22 = vector.broadcast %cst_17 : f32 to vector<4x512xf32>
    %c0_18 = arith.constant 0 : index
    %c0_19 = arith.constant 0 : index
    %23 = vector.load %arg14[%c0_18, %c0_19] : memref<4x512xf32, #tpu.memory_space<vmem>>, vector<4x512xf32>
    tpu.vector_store %arg14[%c0_18, %c0_19], %22 {strides = array<i32>} : memref<4x512xf32, #tpu.memory_space<vmem>>, vector<4x512xf32>,
    %c0_20 = arith.constant 0 : index
    %c128 = arith.constant 128 : index
    %24 = vector.load %arg14[%c0_20, %c128] : memref<4x512xf32, #tpu.memory_space<vmem>>, vector<4x256xf32>
    tpu.vector_store %arg14[%c0_20, %c128], %21 {strides = array<i32>} : memref<4x512xf32, #tpu.memory_space<vmem>>, vector<4x256xf32>,
    %cst_21 = arith.constant 0.000000e+00 : f32
    %25 = vector.broadcast %cst_21 : f32 to vector<4x256xf32>
    %c0_22 = arith.constant 0 : index
    %c111 = arith.constant 111 : index
    %26 = vector.load %arg14[%c0_22, %c111] : memref<4x512xf32, #tpu.memory_space<vmem>>, vector<4x256xf32>
    %c0_23 = arith.constant 0 : index
    %c0_24 = arith.constant 0 : index
    %c0_25 = arith.constant 0 : index
    %27 = vector.load %arg12[%c0_23, %c0_24, %c0_25] : memref<3x1x256xf32, #tpu.memory_space<vmem>>, vector<1x1x256xf32>
    %28 = vector.shape_cast %27 : vector<1x1x256xf32> to vector<1x256xf32>
    %29 = vector.broadcast %28 : vector<1x256xf32> to vector<4x256xf32>
    %30 = arith.mulf %26, %29 : vector<4x256xf32>
    %c0_26 = arith.constant 0 : index
    %c0_27 = arith.constant 0 : index
    %c0_28 = arith.constant 0 : index
    %31 = vector.load %arg6[%c0_26, %c0_27, %c0_28] : memref<9x4x4xf32, #tpu.memory_space<vmem>>, vector<1x4x4xf32>
    %32 = vector.shape_cast %31 : vector<1x4x4xf32> to vector<4x4xf32>
    %cst_29 = arith.constant dense<0.000000e+00> : vector<4x256xf32>
    %33 = tpu.matmul %32, %30, %cst_29 {dimension_numbers = #tpu.dot_dimension_numbers<[1], [0], [0], [1], [0, 0, 1, 1], [], []>} : vector<4x4xf32>, vector<4x256xf32>, vector<4x256xf32> -> vector<4x256xf32>
    %34 = arith.addf %25, %33 : vector<4x256xf32>
    %c0_30 = arith.constant 0 : index
    %c112 = arith.constant 112 : index
    %35 = vector.load %arg14[%c0_30, %c112] : memref<4x512xf32, #tpu.memory_space<vmem>>, vector<4x256xf32>
    %c1 = arith.constant 1 : index
    %c0_31 = arith.constant 0 : index
    %c0_32 = arith.constant 0 : index
    %36 = vector.load %arg12[%c1, %c0_31, %c0_32] : memref<3x1x256xf32, #tpu.memory_space<vmem>>, vector<1x1x256xf32>
    %37 = vector.shape_cast %36 : vector<1x1x256xf32> to vector<1x256xf32>
    %38 = vector.broadcast %37 : vector<1x256xf32> to vector<4x256xf32>
    %39 = arith.mulf %35, %38 : vector<4x256xf32>
    %c1_33 = arith.constant 1 : index
    %c0_34 = arith.constant 0 : index
    %c0_35 = arith.constant 0 : index
    %40 = vector.load %arg6[%c1_33, %c0_34, %c0_35] : memref<9x4x4xf32, #tpu.memory_space<vmem>>, vector<1x4x4xf32>
    %41 = vector.shape_cast %40 : vector<1x4x4xf32> to vector<4x4xf32>
    %cst_36 = arith.constant dense<0.000000e+00> : vector<4x256xf32>
    %42 = tpu.matmul %41, %39, %cst_36 {dimension_numbers = #tpu.dot_dimension_numbers<[1], [0], [0], [1], [0, 0, 1, 1], [], []>} : vector<4x4xf32>, vector<4x256xf32>, vector<4x256xf32> -> vector<4x256xf32>
    %43 = arith.addf %34, %42 : vector<4x256xf32>
    %c0_37 = arith.constant 0 : index
    %c113 = arith.constant 113 : index
    %44 = vector.load %arg14[%c0_37, %c113] : memref<4x512xf32, #tpu.memory_space<vmem>>, vector<4x256xf32>
    %c2 = arith.constant 2 : index
    %c0_38 = arith.constant 0 : index
    %c0_39 = arith.constant 0 : index
    %45 = vector.load %arg12[%c2, %c0_38, %c0_39] : memref<3x1x256xf32, #tpu.memory_space<vmem>>, vector<1x1x256xf32>
    %46 = vector.shape_cast %45 : vector<1x1x256xf32> to vector<1x256xf32>
    %47 = vector.broadcast %46 : vector<1x256xf32> to vector<4x256xf32>
    %48 = arith.mulf %44, %47 : vector<4x256xf32>
    %c2_40 = arith.constant 2 : index
    %c0_41 = arith.constant 0 : index
    %c0_42 = arith.constant 0 : index
    %49 = vector.load %arg6[%c2_40, %c0_41, %c0_42] : memref<9x4x4xf32, #tpu.memory_space<vmem>>, vector<1x4x4xf32>
    %50 = vector.shape_cast %49 : vector<1x4x4xf32> to vector<4x4xf32>
    %cst_43 = arith.constant dense<0.000000e+00> : vector<4x256xf32>
    %51 = tpu.matmul %50, %48, %cst_43 {dimension_numbers = #tpu.dot_dimension_numbers<[1], [0], [0], [1], [0, 0, 1, 1], [], []>} : vector<4x4xf32>, vector<4x256xf32>, vector<4x256xf32> -> vector<4x256xf32>
    %52 = arith.addf %43, %51 : vector<4x256xf32>
    %c0_44 = arith.constant 0 : index
    %c127 = arith.constant 127 : index
    %53 = vector.load %arg14[%c0_44, %c127] : memref<4x512xf32, #tpu.memory_space<vmem>>, vector<4x256xf32>
    %c0_45 = arith.constant 0 : index
    %c0_46 = arith.constant 0 : index
    %c0_47 = arith.constant 0 : index
    %54 = vector.load %arg12[%c0_45, %c0_46, %c0_47] : memref<3x1x256xf32, #tpu.memory_space<vmem>>, vector<1x1x256xf32>
    %55 = vector.shape_cast %54 : vector<1x1x256xf32> to vector<1x256xf32>
    %56 = vector.broadcast %55 : vector<1x256xf32> to vector<4x256xf32>
    %57 = arith.mulf %53, %56 : vector<4x256xf32>
    %c3 = arith.constant 3 : index
    %c0_48 = arith.constant 0 : index
    %c0_49 = arith.constant 0 : index
    %58 = vector.load %arg6[%c3, %c0_48, %c0_49] : memref<9x4x4xf32, #tpu.memory_space<vmem>>, vector<1x4x4xf32>
    %59 = vector.shape_cast %58 : vector<1x4x4xf32> to vector<4x4xf32>
    %cst_50 = arith.constant dense<0.000000e+00> : vector<4x256xf32>
    %60 = tpu.matmul %59, %57, %cst_50 {dimension_numbers = #tpu.dot_dimension_numbers<[1], [0], [0], [1], [0, 0, 1, 1], [], []>} : vector<4x4xf32>, vector<4x256xf32>, vector<4x256xf32> -> vector<4x256xf32>
    %61 = arith.addf %52, %60 : vector<4x256xf32>
    %c0_51 = arith.constant 0 : index
    %c128_52 = arith.constant 128 : index
    %62 = vector.load %arg14[%c0_51, %c128_52] : memref<4x512xf32, #tpu.memory_space<vmem>>, vector<4x256xf32>
    %c1_53 = arith.constant 1 : index
    %c0_54 = arith.constant 0 : index
    %c0_55 = arith.constant 0 : index
    %63 = vector.load %arg12[%c1_53, %c0_54, %c0_55] : memref<3x1x256xf32, #tpu.memory_space<vmem>>, vector<1x1x256xf32>
    %64 = vector.shape_cast %63 : vector<1x1x256xf32> to vector<1x256xf32>
    %65 = vector.broadcast %64 : vector<1x256xf32> to vector<4x256xf32>
    %66 = arith.mulf %62, %65 : vector<4x256xf32>
    %c4 = arith.constant 4 : index
    %c0_56 = arith.constant 0 : index
    %c0_57 = arith.constant 0 : index
    %67 = vector.load %arg6[%c4, %c0_56, %c0_57] : memref<9x4x4xf32, #tpu.memory_space<vmem>>, vector<1x4x4xf32>
    %68 = vector.shape_cast %67 : vector<1x4x4xf32> to vector<4x4xf32>
    %cst_58 = arith.constant dense<0.000000e+00> : vector<4x256xf32>
    %69 = tpu.matmul %68, %66, %cst_58 {dimension_numbers = #tpu.dot_dimension_numbers<[1], [0], [0], [1], [0, 0, 1, 1], [], []>} : vector<4x4xf32>, vector<4x256xf32>, vector<4x256xf32> -> vector<4x256xf32>
    %70 = arith.addf %61, %69 : vector<4x256xf32>
    %c0_59 = arith.constant 0 : index
    %c129 = arith.constant 129 : index
    %71 = vector.load %arg14[%c0_59, %c129] : memref<4x512xf32, #tpu.memory_space<vmem>>, vector<4x256xf32>
    %c2_60 = arith.constant 2 : index
    %c0_61 = arith.constant 0 : index
    %c0_62 = arith.constant 0 : index
    %72 = vector.load %arg12[%c2_60, %c0_61, %c0_62] : memref<3x1x256xf32, #tpu.memory_space<vmem>>, vector<1x1x256xf32>
    %73 = vector.shape_cast %72 : vector<1x1x256xf32> to vector<1x256xf32>
    %74 = vector.broadcast %73 : vector<1x256xf32> to vector<4x256xf32>
    %75 = arith.mulf %71, %74 : vector<4x256xf32>
    %c5 = arith.constant 5 : index
    %c0_63 = arith.constant 0 : index
    %c0_64 = arith.constant 0 : index
    %76 = vector.load %arg6[%c5, %c0_63, %c0_64] : memref<9x4x4xf32, #tpu.memory_space<vmem>>, vector<1x4x4xf32>
    %77 = vector.shape_cast %76 : vector<1x4x4xf32> to vector<4x4xf32>
    %cst_65 = arith.constant dense<0.000000e+00> : vector<4x256xf32>
    %78 = tpu.matmul %77, %75, %cst_65 {dimension_numbers = #tpu.dot_dimension_numbers<[1], [0], [0], [1], [0, 0, 1, 1], [], []>} : vector<4x4xf32>, vector<4x256xf32>, vector<4x256xf32> -> vector<4x256xf32>
    %79 = arith.addf %70, %78 : vector<4x256xf32>
    %c0_66 = arith.constant 0 : index
    %c143 = arith.constant 143 : index
    %80 = vector.load %arg14[%c0_66, %c143] : memref<4x512xf32, #tpu.memory_space<vmem>>, vector<4x256xf32>
    %c0_67 = arith.constant 0 : index
    %c0_68 = arith.constant 0 : index
    %c0_69 = arith.constant 0 : index
    %81 = vector.load %arg12[%c0_67, %c0_68, %c0_69] : memref<3x1x256xf32, #tpu.memory_space<vmem>>, vector<1x1x256xf32>
    %82 = vector.shape_cast %81 : vector<1x1x256xf32> to vector<1x256xf32>
    %83 = vector.broadcast %82 : vector<1x256xf32> to vector<4x256xf32>
    %84 = arith.mulf %80, %83 : vector<4x256xf32>
    %c6 = arith.constant 6 : index
    %c0_70 = arith.constant 0 : index
    %c0_71 = arith.constant 0 : index
    %85 = vector.load %arg6[%c6, %c0_70, %c0_71] : memref<9x4x4xf32, #tpu.memory_space<vmem>>, vector<1x4x4xf32>
    %86 = vector.shape_cast %85 : vector<1x4x4xf32> to vector<4x4xf32>
    %cst_72 = arith.constant dense<0.000000e+00> : vector<4x256xf32>
    %87 = tpu.matmul %86, %84, %cst_72 {dimension_numbers = #tpu.dot_dimension_numbers<[1], [0], [0], [1], [0, 0, 1, 1], [], []>} : vector<4x4xf32>, vector<4x256xf32>, vector<4x256xf32> -> vector<4x256xf32>
    %88 = arith.addf %79, %87 : vector<4x256xf32>
    %c0_73 = arith.constant 0 : index
    %c144 = arith.constant 144 : index
    %89 = vector.load %arg14[%c0_73, %c144] : memref<4x512xf32, #tpu.memory_space<vmem>>, vector<4x256xf32>
    %c1_74 = arith.constant 1 : index
    %c0_75 = arith.constant 0 : index
    %c0_76 = arith.constant 0 : index
    %90 = vector.load %arg12[%c1_74, %c0_75, %c0_76] : memref<3x1x256xf32, #tpu.memory_space<vmem>>, vector<1x1x256xf32>
    %91 = vector.shape_cast %90 : vector<1x1x256xf32> to vector<1x256xf32>
    %92 = vector.broadcast %91 : vector<1x256xf32> to vector<4x256xf32>
    %93 = arith.mulf %89, %92 : vector<4x256xf32>
    %c7 = arith.constant 7 : index
    %c0_77 = arith.constant 0 : index
    %c0_78 = arith.constant 0 : index
    %94 = vector.load %arg6[%c7, %c0_77, %c0_78] : memref<9x4x4xf32, #tpu.memory_space<vmem>>, vector<1x4x4xf32>
    %95 = vector.shape_cast %94 : vector<1x4x4xf32> to vector<4x4xf32>
    %cst_79 = arith.constant dense<0.000000e+00> : vector<4x256xf32>
    %96 = tpu.matmul %95, %93, %cst_79 {dimension_numbers = #tpu.dot_dimension_numbers<[1], [0], [0], [1], [0, 0, 1, 1], [], []>} : vector<4x4xf32>, vector<4x256xf32>, vector<4x256xf32> -> vector<4x256xf32>
    %97 = arith.addf %88, %96 : vector<4x256xf32>
    %c0_80 = arith.constant 0 : index
    %c145 = arith.constant 145 : index
    %98 = vector.load %arg14[%c0_80, %c145] : memref<4x512xf32, #tpu.memory_space<vmem>>, vector<4x256xf32>
    %c2_81 = arith.constant 2 : index
    %c0_82 = arith.constant 0 : index
    %c0_83 = arith.constant 0 : index
    %99 = vector.load %arg12[%c2_81, %c0_82, %c0_83] : memref<3x1x256xf32, #tpu.memory_space<vmem>>, vector<1x1x256xf32>
    %100 = vector.shape_cast %99 : vector<1x1x256xf32> to vector<1x256xf32>
    %101 = vector.broadcast %100 : vector<1x256xf32> to vector<4x256xf32>
    %102 = arith.mulf %98, %101 : vector<4x256xf32>
    %c8 = arith.constant 8 : index
    %c0_84 = arith.constant 0 : index
    %c0_85 = arith.constant 0 : index
    %103 = vector.load %arg6[%c8, %c0_84, %c0_85] : memref<9x4x4xf32, #tpu.memory_space<vmem>>, vector<1x4x4xf32>
    %104 = vector.shape_cast %103 : vector<1x4x4xf32> to vector<4x4xf32>
    %cst_86 = arith.constant dense<0.000000e+00> : vector<4x256xf32>
    %105 = tpu.matmul %104, %102, %cst_86 {dimension_numbers = #tpu.dot_dimension_numbers<[1], [0], [0], [1], [0, 0, 1, 1], [], []>} : vector<4x4xf32>, vector<4x256xf32>, vector<4x256xf32> -> vector<4x256xf32>
    %106 = arith.addf %97, %105 : vector<4x256xf32>
    %c0_87 = arith.constant 0 : index
    %c0_88 = arith.constant 0 : index
    %107 = vector.load %arg7[%c0_87, %c0_88] : memref<4x1xf32, #tpu.memory_space<vmem>>, vector<4x1xf32>
    %108 = vector.broadcast %107 : vector<4x1xf32> to vector<4x256xf32>
    %109 = arith.addf %106, %108 : vector<4x256xf32>
    %cst_89 = arith.constant 0.000000e+00 : f32
    %110 = vector.broadcast %cst_89 : f32 to vector<4x256xf32>
    %111 = arith.maximumf %109, %110 : vector<4x256xf32>
    %c0_90 = arith.constant 0 : index
    %c0_91 = arith.constant 0 : index
    %112 = vector.load %arg8[%c0_90, %c0_91] : memref<8x4xf32, #tpu.memory_space<vmem>>, vector<8x4xf32>
    %cst_92 = arith.constant dense<0.000000e+00> : vector<8x256xf32>
    %113 = tpu.matmul %112, %111, %cst_92 {dimension_numbers = #tpu.dot_dimension_numbers<[1], [0], [0], [1], [0, 0, 1, 1], [], []>} : vector<8x4xf32>, vector<4x256xf32>, vector<8x256xf32> -> vector<8x256xf32>
    %c0_93 = arith.constant 0 : index
    %c0_94 = arith.constant 0 : index
    %114 = vector.load %arg9[%c0_93, %c0_94] : memref<8x1xf32, #tpu.memory_space<vmem>>, vector<8x1xf32>
    %115 = vector.broadcast %114 : vector<8x1xf32> to vector<8x256xf32>
    %116 = arith.addf %113, %115 : vector<8x256xf32>
    %117 = arith.addf %116, %6 : vector<8x256xf32>
    %c0_95 = arith.constant 0 : index
    %c0_96 = arith.constant 0 : index
    %c0_97 = arith.constant 0 : index
    %118 = vector.load %arg13[%c0_95, %c0_96, %c0_97] : memref<1x8x256xf32, #tpu.memory_space<vmem>>, vector<1x8x256xf32>
    %119 = vector.shape_cast %118 : vector<1x8x256xf32> to vector<8x256xf32>
    %120 = vector.shape_cast %117 : vector<8x256xf32> to vector<1x8x256xf32>
    tpu.vector_store %arg13[%c0_95, %c0_96, %c0_97], %120 {strides = array<i32>} : memref<1x8x256xf32, #tpu.memory_space<vmem>>, vector<1x8x256xf32>,
    return
  }
  func.func @transform_0(%arg0: i32) -> (i32, i32, i32) {
    %c0_i32 = arith.constant 0 : i32
    %c0_i32_0 = arith.constant 0 : i32
    %c0_i32_1 = arith.constant 0 : i32
    return %arg0, %c0_i32, %c0_i32_0 : i32, i32, i32
  }
  func.func @transform_1(%arg0: i32) -> (i32, i32) {
    %c0_i32 = arith.constant 0 : i32
    %c0_i32_0 = arith.constant 0 : i32
    %c0_i32_1 = arith.constant 0 : i32
    return %c0_i32, %c0_i32_0 : i32, i32
  }
  func.func @transform_2(%arg0: i32) -> (i32, i32) {
    %c0_i32 = arith.constant 0 : i32
    %c0_i32_0 = arith.constant 0 : i32
    %c0_i32_1 = arith.constant 0 : i32
    return %c0_i32, %c0_i32_0 : i32, i32
  }
  func.func @transform_3(%arg0: i32) -> (i32, i32) {
    %c0_i32 = arith.constant 0 : i32
    %c0_i32_0 = arith.constant 0 : i32
    %c0_i32_1 = arith.constant 0 : i32
    return %c0_i32, %c0_i32_0 : i32, i32
  }
  func.func @transform_4(%arg0: i32) -> (i32, i32) {
    %c0_i32 = arith.constant 0 : i32
    %c0_i32_0 = arith.constant 0 : i32
    %c0_i32_1 = arith.constant 0 : i32
    return %c0_i32, %c0_i32_0 : i32, i32
  }
  func.func @transform_5(%arg0: i32) -> (i32, i32, i32) {
    %c0_i32 = arith.constant 0 : i32
    %c0_i32_0 = arith.constant 0 : i32
    %c0_i32_1 = arith.constant 0 : i32
    %c0_i32_2 = arith.constant 0 : i32
    return %c0_i32, %c0_i32_0, %c0_i32_1 : i32, i32, i32
  }
  func.func @transform_6(%arg0: i32) -> (i32, i32) {
    %c0_i32 = arith.constant 0 : i32
    %c0_i32_0 = arith.constant 0 : i32
    %c0_i32_1 = arith.constant 0 : i32
    return %c0_i32, %c0_i32_0 : i32, i32
  }
  func.func @transform_7(%arg0: i32) -> (i32, i32) {
    %c0_i32 = arith.constant 0 : i32
    %c0_i32_0 = arith.constant 0 : i32
    %c0_i32_1 = arith.constant 0 : i32
    return %c0_i32, %c0_i32_0 : i32, i32
  }
  func.func @transform_8(%arg0: i32) -> (i32, i32) {
    %c0_i32 = arith.constant 0 : i32
    %c0_i32_0 = arith.constant 0 : i32
    %c0_i32_1 = arith.constant 0 : i32
    return %c0_i32, %c0_i32_0 : i32, i32
  }
  func.func @transform_9(%arg0: i32) -> (i32, i32) {
    %c0_i32 = arith.constant 0 : i32
    %c0_i32_0 = arith.constant 0 : i32
    %c0_i32_1 = arith.constant 0 : i32
    return %c0_i32, %c0_i32_0 : i32, i32
  }
  func.func @transform_10(%arg0: i32) -> (i32, i32) {
    %c0_i32 = arith.constant 0 : i32
    %c0_i32_0 = arith.constant 0 : i32
    %c0_i32_1 = arith.constant 0 : i32
    return %c0_i32, %c0_i32_0 : i32, i32
  }
  func.func @transform_11(%arg0: i32) -> (i32, i32, i32) {
    %c0_i32 = arith.constant 0 : i32
    %c0_i32_0 = arith.constant 0 : i32
    %c0_i32_1 = arith.constant 0 : i32
    %c0_i32_2 = arith.constant 0 : i32
    return %c0_i32, %c0_i32_0, %c0_i32_1 : i32, i32, i32
  }
  func.func @transform_12(%arg0: i32) -> (i32, i32, i32) {
    %c0_i32 = arith.constant 0 : i32
    %c0_i32_0 = arith.constant 0 : i32
    %c0_i32_1 = arith.constant 0 : i32
    return %arg0, %c0_i32, %c0_i32_0 : i32, i32, i32
  }
}

</mosaic_0001>

<llo_original>
// kernel: residual_forward.1
$region0: #{residual_forward.1}
  #allocation0 [shape = 'u32[]', space=smem, size = 0x4, offset = 0x4, fixed_abs, tag = 'smem constant byte address 0x4 - core index']
  #allocation1 [shape = 'u32[72,128]{1,0:T(1,128)}', space=vmem, size = 0x9000, scoped, tag = 'internal scratch']
  #allocation2 [shape = 'f32[4,512]{1,0:T(4,128)}', space=vmem, size = 0x2000, scoped, tag = 'scratch operand']
  %s0 = inlined_call_operand.vmem [shape: f32[2,4,256], index: 0, kind: input, shape index: {}]
  %s1 = inlined_call_operand.vmem [shape: f32[4,1], index: 1, kind: input, shape index: {}]
  %s2 = inlined_call_operand.vmem [shape: f32[4,1], index: 2, kind: input, shape index: {}]
  %s3 = inlined_call_operand.vmem [shape: f32[4,4], index: 3, kind: input, shape index: {}]
  %s4 = inlined_call_operand.vmem [shape: f32[4,1], index: 4, kind: input, shape index: {}]
  %s5 = inlined_call_operand.vmem [shape: f32[9,4,4], index: 5, kind: input, shape index: {}]
  %s6 = inlined_call_operand.vmem [shape: f32[4,1], index: 6, kind: input, shape index: {}]
  %s7 = inlined_call_operand.vmem [shape: f32[8,4], index: 7, kind: input, shape index: {}]
  %s8 = inlined_call_operand.vmem [shape: f32[8,1], index: 8, kind: input, shape index: {}]
  %s9 = inlined_call_operand.vmem [shape: f32[8,4], index: 9, kind: input, shape index: {}]
  %s10 = inlined_call_operand.vmem [shape: f32[8,1], index: 10, kind: input, shape index: {}]
  %s11 = inlined_call_operand.vmem [shape: f32[3,1,256], index: 11, kind: input, shape index: {}]
  %s12 = inlined_call_operand.vmem [shape: f32[2,8,256], index: 12, kind: output, shape index: {}]
  %s13 = sld [smem:[#allocation0]]
  $region81: #{residual_forward.1} parent=0
    _
  %s15 = ssub.s32 1, %s13
  %s16 = scalar_select 0, %s15, %s13
  loop: start=0, step=1, limit=4
  $region2: #{residual_forward.1} parent=0 // loop_pre_header
    _
  $region3: #{residual_forward.1} parent=0 // loop_header
    %s18 = sphi 0, %s22
    %p19 = scmp.ge.s32.totalorder %s18, 4
    %s28 = sphi 0, %s30
    %s31 = sphi 0, %s28
    %s32 = sphi 0, %s31
    %s48 = sphi 0, %s32
    %s52 = sphi 0, %s52
    %s54 = sphi 0, %s52
    %s55 = sphi 0, %s54
    %s69 = sphi 0, %s55
    %s73 = sphi 0, %s73
    %s75 = sphi 0, %s73
    %s76 = sphi 0, %s75
    %s90 = sphi 0, %s76
    %s94 = sphi 0, %s94
    %s96 = sphi 0, %s94
    %s97 = sphi 0, %s96
    %s111 = sphi 0, %s97
    %s115 = sphi 0, %s115
    %s117 = sphi 0, %s115
    %s118 = sphi 0, %s117
    %s132 = sphi 0, %s118
    %s136 = sphi 0, %s136
    %s138 = sphi 0, %s136
    %s139 = sphi 0, %s138
    %s153 = sphi 0, %s139
    %s157 = sphi 0, %s157
    %s159 = sphi 0, %s157
    %s160 = sphi 0, %s159
    %s174 = sphi 0, %s160
    %s178 = sphi 0, %s178
    %s180 = sphi 0, %s178
    %s181 = sphi 0, %s180
    %s195 = sphi 0, %s181
    %s199 = sphi 0, %s199
    %s201 = sphi 0, %s199
    %s202 = sphi 0, %s201
    %s216 = sphi 0, %s202
    %s220 = sphi 0, %s220
    %s222 = sphi 0, %s220
    %s223 = sphi 0, %s222
    %s237 = sphi 0, %s223
    %s241 = sphi 0, %s241
    %s243 = sphi 0, %s241
    %s244 = sphi 0, %s243
    %s258 = sphi 0, %s244
    %s262 = sphi 0, %s262
    %s264 = sphi 0, %s262
    %s265 = sphi 0, %s264
    %s279 = sphi 0, %s265
    %s285 = sphi 0, %s287
    %s288 = sphi 0, %s285
    %s289 = sphi 0, %s288
    %s305 = sphi 0, %s289
  $region4: #{residual_forward.1} parent=0 // loop_header_branch
    %21 = sbr.rel (%p19) target = $region8
  $region5: #{residual_forward.1} parent=0 // loop_body
    %s23 = ssub.s32 %s18, 1
    %s24 = ssub.s32 %s18, 2
    %s25 = sadd.s32 %s18, 1
    %s26 = ssub.s32 %s18, %s25
    %p27 = scmp.eq.s32.totalorder %s26, 0
    %s29 = sadd.s32 %s28, 1
    %s30 = scalar_select %p27, %s28, %s29
    %p33 = pneg %p27
    %p34 = scmp.eq.s32.totalorder %s18, 1
    %p35 = por %p33, %p34
    %p36 = scmp.ne.s32.totalorder %s28, %s31
    %p37 = scmp.eq.s32.totalorder %s18, 0
    %p38 = por %p36, %p37
    %p39 = scmp.ne.s32.totalorder %s28, %s31
    %p40 = scmp.eq.s32.totalorder %s23, 1
    %p41 = por %p39, %p40
    %p42 = scmp.ne.s32.totalorder %s31, %s32
    %p43 = scmp.eq.s32.totalorder %s23, 0
    %p44 = por %p42, %p43
    %p45 = scmp.ne.s32.totalorder %s31, %s32
    %p46 = scmp.eq.s32.totalorder %s24, 1
    %p47 = por %p45, %p46
    %p49 = scmp.ne.s32.totalorder %s32, %s48
    %p50 = scmp.eq.s32.totalorder %s24, 0
    %p51 = por %p49, %p50
    %s53 = sadd.s32 %s52, 1
    %p56 = scmp.eq.s32.totalorder %s18, 1
    %p57 = scmp.ne.s32.totalorder %s52, %s54
    %p58 = scmp.eq.s32.totalorder %s18, 0
    %p59 = por %p57, %p58
    %p60 = scmp.ne.s32.totalorder %s52, %s54
    %p61 = scmp.eq.s32.totalorder %s23, 1
    %p62 = por %p60, %p61
    %p63 = scmp.ne.s32.totalorder %s54, %s55
    %p64 = scmp.eq.s32.totalorder %s23, 0
    %p65 = por %p63, %p64
    %p66 = scmp.ne.s32.totalorder %s54, %s55
    %p67 = scmp.eq.s32.totalorder %s24, 1
    %p68 = por %p66, %p67
    %p70 = scmp.ne.s32.totalorder %s55, %s69
    %p71 = scmp.eq.s32.totalorder %s24, 0
    %p72 = por %p70, %p71
    %s74 = sadd.s32 %s73, 1
    %p77 = scmp.eq.s32.totalorder %s18, 1
    %p78 = scmp.ne.s32.totalorder %s73, %s75
    %p79 = scmp.eq.s32.totalorder %s18, 0
    %p80 = por %p78, %p79
    %p81 = scmp.ne.s32.totalorder %s73, %s75
    %p82 = scmp.eq.s32.totalorder %s23, 1
    %p83 = por %p81, %p82
    %p84 = scmp.ne.s32.totalorder %s75, %s76
    %p85 = scmp.eq.s32.totalorder %s23, 0
    %p86 = por %p84, %p85
    %p87 = scmp.ne.s32.totalorder %s75, %s76
    %p88 = scmp.eq.s32.totalorder %s24, 1
    %p89 = por %p87, %p88
    %p91 = scmp.ne.s32.totalorder %s76, %s90
    %p92 = scmp.eq.s32.totalorder %s24, 0
    %p93 = por %p91, %p92
    %s95 = sadd.s32 %s94, 1
    %p98 = scmp.eq.s32.totalorder %s18, 1
    %p99 = scmp.ne.s32.totalorder %s94, %s96
    %p100 = scmp.eq.s32.totalorder %s18, 0
    %p101 = por %p99, %p100
    %p102 = scmp.ne.s32.totalorder %s94, %s96
    %p103 = scmp.eq.s32.totalorder %s23, 1
    %p104 = por %p102, %p103
    %p105 = scmp.ne.s32.totalorder %s96, %s97
    %p106 = scmp.eq.s32.totalorder %s23, 0
    %p107 = por %p105, %p106
    %p108 = scmp.ne.s32.totalorder %s96, %s97
    %p109 = scmp.eq.s32.totalorder %s24, 1
    %p110 = por %p108, %p109
    %p112 = scmp.ne.s32.totalorder %s97, %s111
    %p113 = scmp.eq.s32.totalorder %s24, 0
    %p114 = por %p112, %p113
    %s116 = sadd.s32 %s115, 1
    %p119 = scmp.eq.s32.totalorder %s18, 1
    %p120 = scmp.ne.s32.totalorder %s115, %s117
    %p121 = scmp.eq.s32.totalorder %s18, 0
    %p122 = por %p120, %p121
    %p123 = scmp.ne.s32.totalorder %s115, %s117
    %p124 = scmp.eq.s32.totalorder %s23, 1
    %p125 = por %p123, %p124
    %p126 = scmp.ne.s32.totalorder %s117, %s118
    %p127 = scmp.eq.s32.totalorder %s23, 0
    %p128 = por %p126, %p127
    %p129 = scmp.ne.s32.totalorder %s117, %s118
    %p130 = scmp.eq.s32.totalorder %s24, 1
    %p131 = por %p129, %p130
    %p133 = scmp.ne.s32.totalorder %s118, %s132
    %p134 = scmp.eq.s32.totalorder %s24, 0
    %p135 = por %p133, %p134
    %s137 = sadd.s32 %s136, 1
    %p140 = scmp.eq.s32.totalorder %s18, 1
    %p141 = scmp.ne.s32.totalorder %s136, %s138
    %p142 = scmp.eq.s32.totalorder %s18, 0
    %p143 = por %p141, %p142
    %p144 = scmp.ne.s32.totalorder %s136, %s138
    %p145 = scmp.eq.s32.totalorder %s23, 1
    %p146 = por %p144, %p145
    %p147 = scmp.ne.s32.totalorder %s138, %s139
    %p148 = scmp.eq.s32.totalorder %s23, 0
    %p149 = por %p147, %p148
    %p150 = scmp.ne.s32.totalorder %s138, %s139
    %p151 = scmp.eq.s32.totalorder %s24, 1
    %p152 = por %p150, %p151
    %p154 = scmp.ne.s32.totalorder %s139, %s153
    %p155 = scmp.eq.s32.totalorder %s24, 0
    %p156 = por %p154, %p155
    %s158 = sadd.s32 %s157, 1
    %p161 = scmp.eq.s32.totalorder %s18, 1
    %p162 = scmp.ne.s32.totalorder %s157, %s159
    %p163 = scmp.eq.s32.totalorder %s18, 0
    %p164 = por %p162, %p163
    %p165 = scmp.ne.s32.totalorder %s157, %s159
    %p166 = scmp.eq.s32.totalorder %s23, 1
    %p167 = por %p165, %p166
    %p168 = scmp.ne.s32.totalorder %s159, %s160
    %p169 = scmp.eq.s32.totalorder %s23, 0
    %p170 = por %p168, %p169
    %p171 = scmp.ne.s32.totalorder %s159, %s160
    %p172 = scmp.eq.s32.totalorder %s24, 1
    %p173 = por %p171, %p172
    %p175 = scmp.ne.s32.totalorder %s160, %s174
    %p176 = scmp.eq.s32.totalorder %s24, 0
    %p177 = por %p175, %p176
    %s179 = sadd.s32 %s178, 1
    %p182 = scmp.eq.s32.totalorder %s18, 1
    %p183 = scmp.ne.s32.totalorder %s178, %s180
    %p184 = scmp.eq.s32.totalorder %s18, 0
    %p185 = por %p183, %p184
    %p186 = scmp.ne.s32.totalorder %s178, %s180
    %p187 = scmp.eq.s32.totalorder %s23, 1
    %p188 = por %p186, %p187
    %p189 = scmp.ne.s32.totalorder %s180, %s181
    %p190 = scmp.eq.s32.totalorder %s23, 0
    %p191 = por %p189, %p190
    %p192 = scmp.ne.s32.totalorder %s180, %s181
    %p193 = scmp.eq.s32.totalorder %s24, 1
    %p194 = por %p192, %p193
    %p196 = scmp.ne.s32.totalorder %s181, %s195
    %p197 = scmp.eq.s32.totalorder %s24, 0
    %p198 = por %p196, %p197
    %s200 = sadd.s32 %s199, 1
    %p203 = scmp.eq.s32.totalorder %s18, 1
    %p204 = scmp.ne.s32.totalorder %s199, %s201
    %p205 = scmp.eq.s32.totalorder %s18, 0
    %p206 = por %p204, %p205
    %p207 = scmp.ne.s32.totalorder %s199, %s201
    %p208 = scmp.eq.s32.totalorder %s23, 1
    %p209 = por %p207, %p208
    %p210 = scmp.ne.s32.totalorder %s201, %s202
    %p211 = scmp.eq.s32.totalorder %s23, 0
    %p212 = por %p210, %p211
    %p213 = scmp.ne.s32.totalorder %s201, %s202
    %p214 = scmp.eq.s32.totalorder %s24, 1
    %p215 = por %p213, %p214
    %p217 = scmp.ne.s32.totalorder %s202, %s216
    %p218 = scmp.eq.s32.totalorder %s24, 0
    %p219 = por %p217, %p218
    %s221 = sadd.s32 %s220, 1
    %p224 = scmp.eq.s32.totalorder %s18, 1
    %p225 = scmp.ne.s32.totalorder %s220, %s222
    %p226 = scmp.eq.s32.totalorder %s18, 0
    %p227 = por %p225, %p226
    %p228 = scmp.ne.s32.totalorder %s220, %s222
    %p229 = scmp.eq.s32.totalorder %s23, 1
    %p230 = por %p228, %p229
    %p231 = scmp.ne.s32.totalorder %s222, %s223
    %p232 = scmp.eq.s32.totalorder %s23, 0
    %p233 = por %p231, %p232
    %p234 = scmp.ne.s32.totalorder %s222, %s223
    %p235 = scmp.eq.s32.totalorder %s24, 1
    %p236 = por %p234, %p235
    %p238 = scmp.ne.s32.totalorder %s223, %s237
    %p239 = scmp.eq.s32.totalorder %s24, 0
    %p240 = por %p238, %p239
    %s242 = sadd.s32 %s241, 1
    %p245 = scmp.eq.s32.totalorder %s18, 1
    %p246 = scmp.ne.s32.totalorder %s241, %s243
    %p247 = scmp.eq.s32.totalorder %s18, 0
    %p248 = por %p246, %p247
    %p249 = scmp.ne.s32.totalorder %s241, %s243
    %p250 = scmp.eq.s32.totalorder %s23, 1
    %p251 = por %p249, %p250
    %p252 = scmp.ne.s32.totalorder %s243, %s244
    %p253 = scmp.eq.s32.totalorder %s23, 0
    %p254 = por %p252, %p253
    %p255 = scmp.ne.s32.totalorder %s243, %s244
    %p256 = scmp.eq.s32.totalorder %s24, 1
    %p257 = por %p255, %p256
    %p259 = scmp.ne.s32.totalorder %s244, %s258
    %p260 = scmp.eq.s32.totalorder %s24, 0
    %p261 = por %p259, %p260
    %s263 = sadd.s32 %s262, 1
    %p266 = scmp.eq.s32.totalorder %s18, 1
    %p267 = scmp.ne.s32.totalorder %s262, %s264
    %p268 = scmp.eq.s32.totalorder %s18, 0
    %p269 = por %p267, %p268
    %p270 = scmp.ne.s32.totalorder %s262, %s264
    %p271 = scmp.eq.s32.totalorder %s23, 1
    %p272 = por %p270, %p271
    %p273 = scmp.ne.s32.totalorder %s264, %s265
    %p274 = scmp.eq.s32.totalorder %s23, 0
    %p275 = por %p273, %p274
    %p276 = scmp.ne.s32.totalorder %s264, %s265
    %p277 = scmp.eq.s32.totalorder %s24, 1
    %p278 = por %p276, %p277
    %p280 = scmp.ne.s32.totalorder %s265, %s279
    %p281 = scmp.eq.s32.totalorder %s24, 0
    %p282 = por %p280, %p281
    %s283 = ssub.s32 %s18, %s25
    %p284 = scmp.eq.s32.totalorder %s283, 0
    %s286 = sadd.s32 %s285, 1
    %s287 = scalar_select %p284, %s285, %s286
    %p290 = pneg %p284
    %p291 = scmp.eq.s32.totalorder %s18, 1
    %p292 = por %p290, %p291
    %p293 = scmp.ne.s32.totalorder %s285, %s288
    %p294 = scmp.eq.s32.totalorder %s18, 0
    %p295 = por %p293, %p294
    %p296 = scmp.ne.s32.totalorder %s285, %s288
    %p297 = scmp.eq.s32.totalorder %s23, 1
    %p298 = por %p296, %p297
    %p299 = scmp.ne.s32.totalorder %s288, %s289
    %p300 = scmp.eq.s32.totalorder %s23, 0
    %p301 = por %p299, %p300
    %p302 = scmp.ne.s32.totalorder %s288, %s289
    %p303 = scmp.eq.s32.totalorder %s24, 1
    %p304 = por %p302, %p303
    %p306 = scmp.ne.s32.totalorder %s289, %s305
    %p307 = scmp.eq.s32.totalorder %s24, 0
    %p308 = por %p306, %p307
    %p309 = scmp.le.s32.totalorder 1, %s18
    %p310 = scmp.lt.s32.totalorder %s18, 3
    %p311 = pnand %p309, %p310
    %p312 = pneg %p311
    // Predicated region
    $region9: #{residual_forward.1} parent=5 // pred_check
      _
    $region10: #{residual_forward.1} parent=5 // pred_check_branch
      %314 = sbr.rel (%p311) target = $region12
    $region11: #{residual_forward.1} parent=5 // pred_region
      %s315 = ssub.s32 %s18, 1
      // Predicated region
      $region13: #{residual_forward.1} parent=11 // pred_check
        %p316 = pneg %p65
      $region14: #{residual_forward.1} parent=11 // pred_check_branch
        %318 = sbr.rel (%p316) target = $region16
      $region15: #{residual_forward.1} parent=11 // pred_region
        _
      $region16: #{residual_forward.1} parent=11 // pred_fallthru
        _
      // Predicated region
      $region17: #{residual_forward.1} parent=11 // pred_check
        %p319 = pneg %p86
      $region18: #{residual_forward.1} parent=11 // pred_check_branch
        %321 = sbr.rel (%p319) target = $region20
      $region19: #{residual_forward.1} parent=11 // pred_region
        _
      $region20: #{residual_forward.1} parent=11 // pred_fallthru
        _
      // Predicated region
      $region21: #{residual_forward.1} parent=11 // pred_check
        %p322 = pneg %p107
      $region22: #{residual_forward.1} parent=11 // pred_check_branch
        %324 = sbr.rel (%p322) target = $region24
      $region23: #{residual_forward.1} parent=11 // pred_region
        _
      $region24: #{residual_forward.1} parent=11 // pred_fallthru
        _
      // Predicated region
      $region25: #{residual_forward.1} parent=11 // pred_check
        %p325 = pneg %p128
      $region26: #{residual_forward.1} parent=11 // pred_check_branch
        %327 = sbr.rel (%p325) target = $region28
      $region27: #{residual_forward.1} parent=11 // pred_region
        _
      $region28: #{residual_forward.1} parent=11 // pred_fallthru
        _
      // Predicated region
      $region29: #{residual_forward.1} parent=11 // pred_check
        %p328 = pneg %p149
      $region30: #{residual_forward.1} parent=11 // pred_check_branch
        %330 = sbr.rel (%p328) target = $region32
      $region31: #{residual_forward.1} parent=11 // pred_region
        _
      $region32: #{residual_forward.1} parent=11 // pred_fallthru
        _
      // Predicated region
      $region33: #{residual_forward.1} parent=11 // pred_check
        %p331 = pneg %p170
      $region34: #{residual_forward.1} parent=11 // pred_check_branch
        %333 = sbr.rel (%p331) target = $region36
      $region35: #{residual_forward.1} parent=11 // pred_region
        _
      $region36: #{residual_forward.1} parent=11 // pred_fallthru
        _
      // Predicated region
      $region37: #{residual_forward.1} parent=11 // pred_check
        %p334 = pneg %p191
      $region38: #{residual_forward.1} parent=11 // pred_check_branch
        %336 = sbr.rel (%p334) target = $region40
      $region39: #{residual_forward.1} parent=11 // pred_region
        _
      $region40: #{residual_forward.1} parent=11 // pred_fallthru
        _
      // Predicated region
      $region41: #{residual_forward.1} parent=11 // pred_check
        %p337 = pneg %p212
      $region42: #{residual_forward.1} parent=11 // pred_check_branch
        %339 = sbr.rel (%p337) target = $region44
      $region43: #{residual_forward.1} parent=11 // pred_region
        _
      $region44: #{residual_forward.1} parent=11 // pred_fallthru
        _
      // Predicated region
      $region45: #{residual_forward.1} parent=11 // pred_check
        %p340 = pneg %p233
      $region46: #{residual_forward.1} parent=11 // pred_check_branch
        %342 = sbr.rel (%p340) target = $region48
      $region47: #{residual_forward.1} parent=11 // pred_region
        _
      $region48: #{residual_forward.1} parent=11 // pred_fallthru
        _
      // Predicated region
      $region49: #{residual_forward.1} parent=11 // pred_check
        %p343 = pneg %p254
      $region50: #{residual_forward.1} parent=11 // pred_check_branch
        %345 = sbr.rel (%p343) target = $region52
      $region51: #{residual_forward.1} parent=11 // pred_region
        _
      $region52: #{residual_forward.1} parent=11 // pred_fallthru
        _
      // Predicated region
      $region53: #{residual_forward.1} parent=11 // pred_check
        %p346 = pneg %p275
      $region54: #{residual_forward.1} parent=11 // pred_check_branch
        %348 = sbr.rel (%p346) target = $region56
      $region55: #{residual_forward.1} parent=11 // pred_region
        _
      $region56: #{residual_forward.1} parent=11 // pred_fallthru
        _
    $region12: #{residual_forward.1} parent=5 // pred_fallthru
      _
    %p349 = scmp.lt.s32.totalorder %s18, 2
    // Predicated region
    $region57: #{residual_forward.1} parent=5 // pred_check
      %p350 = pneg %p349
    $region58: #{residual_forward.1} parent=5 // pred_check_branch
      %352 = sbr.rel (%p350) target = $region60
    $region59: #{residual_forward.1} parent=5 // pred_region
      // Predicated region
      $region61: #{residual_forward.1} parent=59 // pred_check
        %p353 = pneg %p38
      $region62: #{residual_forward.1} parent=59 // pred_check_branch
        %355 = sbr.rel (%p353) target = $region64
      $region63: #{residual_forward.1} parent=59 // pred_region
        %p356 = scmp.lt.s32.totalorder %s18, 1
        %s357 = scalar_select %p356, %s18, 1
        %s358 = smul.addr %s357, 2
        %s359 = smul.addr %s358, 4
        %s360 = scalar_lea.vmem %s0, %s359
      $region64: #{residual_forward.1} parent=59 // pred_fallthru
        _
    $region60: #{residual_forward.1} parent=5 // pred_fallthru
      _
    %p361 = scmp.le.s32.totalorder 1, %s18
    %p362 = scmp.lt.s32.totalorder %s18, 3
    %p363 = pnand %p361, %p362
    %p364 = pneg %p363
    // Predicated region
    $region65: #{residual_forward.1} parent=5 // pred_check
      _
    $region66: #{residual_forward.1} parent=5 // pred_check_branch
      %366 = sbr.rel (%p363) target = $region68
    $region67: #{residual_forward.1} parent=5 // pred_region
      %s367 = ssub.s32 %s18, 1
      %p368 = scmp.lt.s32.totalorder %s23, 1
      %s369 = scalar_select %p368, %s23, 1
      %s370 = smul.addr %s369, 2
      %s371 = smul.addr %s370, 4
      %s372 = scalar_lea.vmem %s0, %s371
      %p373 = pneg %p44
      %p374 = pneg %p41
      %p375 = pneg %p65
      %p376 = pneg %p62
      %p377 = pneg %p86
      %p378 = pneg %p83
      %p379 = pneg %p107
      %p380 = pneg %p104
      %p381 = pneg %p128
      %p382 = pneg %p125
      %p383 = pneg %p149
      %p384 = pneg %p146
      %p385 = pneg %p170
      %p386 = pneg %p167
      %p387 = pneg %p191
      %p388 = pneg %p188
      %p389 = pneg %p212
      %p390 = pneg %p209
      %p391 = pneg %p233
      %p392 = pneg %p230
      %p393 = pneg %p254
      %p394 = pneg %p251
      %p395 = pneg %p275
      %p396 = pneg %p272
      %p397 = pneg %p301
      %p398 = pneg %p298
      %p399 = scmp.lt.s32.totalorder %s23, 1
      %s400 = scalar_select %p399, %s23, 1
      %s401 = smul.addr %s400, 2
      %s402 = smul.addr %s401, 8
      %s403 = scalar_lea.vmem %s12, %s402
      %p404 = scmp.lt.s32.totalorder %s23, 1
      %s405 = scalar_select %p404, %s23, 1
      %s406 = smul.addr %s405, 2
      %s407 = smul.addr %s406, 4
      %s408 = scalar_lea.vmem %s0, %s407
      %p409 = scmp.lt.s32.totalorder %s23, 1
      %s410 = scalar_select %p409, %s23, 1
      %s411 = smul.addr %s410, 2
      %s412 = smul.addr %s411, 8
      %s413 = scalar_lea.vmem %s12, %s412
      %v414 = vld [vmem:[%s408] sm:$0xff]
      %v415 = vld [vmem:[%s9] sm:$0xff]
      %v416 = vld [vmem:[%s10] sm:$0xff]
      %418 = vset.pattern.permute.xlu0 0
      %419 = vperm.xlu0 %418, %v416
      %v420 = vpop.permute.xlu0 %419
      %423 = vst [vmem:[#allocation1] ss:$2 sm:$0xff] %v414
      %v424 = vld.sshfl [vmem:[#allocation1] sm:$0xff pattern:$0x75316420]
      %v425 = vld.sshfl [vmem:[#allocation1 + $0x8] sm:$0xff pattern:$0x75316420]
      %vm426 = vcmask 31744
      %v428 = vsel %vm426, %v415, 0
      %vm430 = vcmask 1043456
      %v431 = vsel %vm430, %v424, 0
      %v433 = vsel %vm430, %v425, 0
      %435 = vmatpush.msra.mxu0 0.0
      %436 = vmatpush.msra.mxu0 0.0
      %437 = vmatpush.msra.mxu0 0.0
      %438 = vmatpush.msra.mxu0 0.0
      %439 = vmatpush.msra.mxu0 0.0
      %440 = vmatpush.msra.mxu0 0.0
      %441 = vmatpush.msra.mxu0 0.0
      %442 = vmatpush.msra.mxu0 0.0
      %443 = vmatpush.msra.mxu0 0.0
      %444 = vmatpush.msra.mxu0 0.0
      %445 = vmatpush.msra.mxu0 0.0
      %446 = vmatpush.msra.mxu0 0.0
      %447 = vmatpush.msra.mxu0 0.0
      %448 = vmatpush.msra.mxu0 0.0
      %449 = vmatpush.msra.mxu0 0.0
      %450 = vmatpush.msra.mxu0 %v431
      %451 = vmatmul.f32.gmra.mxu0 %v428
      %v452 = vpop.f32.mrf.mxu0
      %v453 = vadd.f32 %v420, %v452
      %454 = vdwg.mxu0
      %455 = vmatpush.msra.mxu0 0.0
      %456 = vmatpush.msra.mxu0 0.0
      %457 = vmatpush.msra.mxu0 0.0
      %458 = vmatpush.msra.mxu0 0.0
      %459 = vmatpush.msra.mxu0 0.0
      %460 = vmatpush.msra.mxu0 0.0
      %461 = vmatpush.msra.mxu0 0.0
      %462 = vmatpush.msra.mxu0 0.0
      %463 = vmatpush.msra.mxu0 0.0
      %464 = vmatpush.msra.mxu0 0.0
      %465 = vmatpush.msra.mxu0 0.0
      %466 = vmatpush.msra.mxu0 0.0
      %467 = vmatpush.msra.mxu0 0.0
      %468 = vmatpush.msra.mxu0 0.0
      %469 = vmatpush.msra.mxu0 0.0
      %470 = vmatpush.msra.mxu0 %v433
      %471 = vmatmul.f32.gmra.mxu0 %v428
      %v472 = vpop.f32.mrf.mxu0
      %v473 = vadd.f32 %v420, %v472
      %474 = vdwg.mxu0
      %v475 = vld [vmem:[%s1] sm:$0xf]
      %477 = vset.pattern.permute.xlu0 0
      %478 = vperm.xlu0 %477, %v475
      %v479 = vpop.permute.xlu0 %478
      %v481 = vunpack.c.l.s4 839922192
      %v482 = vunpack.c.0.s8 %v481
      %v483 = vperm.slane %v479, %v482
      %v485 = vmul.f32 %v414, %v483
      %v486 = vld [vmem:[%s2] sm:$0xf]
      %488 = vset.pattern.permute.xlu0 0
      %489 = vperm.xlu0 %488, %v486
      %v490 = vpop.permute.xlu0 %489
      %v492 = vunpack.c.l.s4 839922192
      %v493 = vunpack.c.0.s8 %v492
      %v494 = vperm.slane %v490, %v493
      %v496 = vadd.f32 %v485, %v494
      %v497 = vmax.f32 %v496, 0.0
      %v498 = vld [vmem:[%s3] sm:$0xf]
      %v499 = vld [vmem:[%s4] sm:$0xf]
      %501 = vset.pattern.permute.xlu0 0
      %502 = vperm.xlu0 %501, %v499
      %v503 = vpop.permute.xlu0 %502
      %506 = vst [vmem:[#allocation1] ss:$2 sm:$0xff] %v497
      %v507 = vld.sshfl [vmem:[#allocation1] sm:$0xff pattern:$0x75316420]
      %v508 = vld.sshfl [vmem:[#allocation1 + $0x8] sm:$0xff pattern:$0x75316420]
      %v510 = vsel %vm426, %v498, 0
      %v512 = vsel %vm430, %v507, 0
      %v514 = vsel %vm430, %v508, 0
      %516 = vmatpush.msra.mxu0 0.0
      %517 = vmatpush.msra.mxu0 0.0
      %518 = vmatpush.msra.mxu0 0.0
      %519 = vmatpush.msra.mxu0 0.0
      %520 = vmatpush.msra.mxu0 0.0
      %521 = vmatpush.msra.mxu0 0.0
      %522 = vmatpush.msra.mxu0 0.0
      %523 = vmatpush.msra.mxu0 0.0
      %524 = vmatpush.msra.mxu0 0.0
      %525 = vmatpush.msra.mxu0 0.0
      %526 = vmatpush.msra.mxu0 0.0
      %527 = vmatpush.msra.mxu0 0.0
      %528 = vmatpush.msra.mxu0 0.0
      %529 = vmatpush.msra.mxu0 0.0
      %530 = vmatpush.msra.mxu0 0.0
      %531 = vmatpush.msra.mxu0 %v512
      %532 = vmatmul.f32.gmra.mxu0 %v510
      %v533 = vpop.f32.mrf.mxu0
      %v534 = vadd.f32 %v503, %v533
      %535 = vdwg.mxu0
      %536 = vmatpush.msra.mxu0 0.0
      %537 = vmatpush.msra.mxu0 0.0
      %538 = vmatpush.msra.mxu0 0.0
      %539 = vmatpush.msra.mxu0 0.0
      %540 = vmatpush.msra.mxu0 0.0
      %541 = vmatpush.msra.mxu0 0.0
      %542 = vmatpush.msra.mxu0 0.0
      %543 = vmatpush.msra.mxu0 0.0
      %544 = vmatpush.msra.mxu0 0.0
      %545 = vmatpush.msra.mxu0 0.0
      %546 = vmatpush.msra.mxu0 0.0
      %547 = vmatpush.msra.mxu0 0.0
      %548 = vmatpush.msra.mxu0 0.0
      %549 = vmatpush.msra.mxu0 0.0
      %550 = vmatpush.msra.mxu0 0.0
      %551 = vmatpush.msra.mxu0 %v514
      %552 = vmatmul.f32.gmra.mxu0 %v510
      %v553 = vpop.f32.mrf.mxu0
      %v554 = vadd.f32 %v503, %v553
      %555 = vdwg.mxu0
      %v556 = vmax.f32 %v534, 0.0
      %v557 = vmax.f32 %v554, 0.0
      %558 = vst [vmem:[#allocation2] sm:$0xff] 0.0
      %559 = vst [vmem:[#allocation2 + $0x8] sm:$0xff] 0.0
      %v562 = vrot.slane %v557, 4
      %v563 = vsel %vm430, %v556, %v562
      %565 = vst [vmem:[#allocation2 + $0x4] sm:$0xff] %v563
      %v566 = vld [vmem:[#allocation2] sm:$0xff]
      %v567 = vld [vmem:[#allocation2 + $0x8] sm:$0xf]
      %v568 = vld [vmem:[%s11] sm:$0x3]
      %v570 = vperm.slane %v568, 0
      %v571 = vperm.slane %v568, 1
      %v572 = vrot.slane %v571, 4
      %v573 = vsel %vm430, %v570, %v572
      %574 = vrot.lane.b32.xlu0 %v573, 111
      %v575 = vpop.permute.xlu0 %574
      %v576 = vrot.slane %v575, 4
      %vm577 = vcmask 908288
      %v578 = vsel %vm577, %v576, %v575
      %v581 = vmul.f32 %v566, %v578
      %v582 = vmul.f32 %v567, %v576
      %v583 = vld [vmem:[%s5] sm:$0xf]
      %s584 = scalar_lea.vmem %s11, 2
      %v585 = vld [vmem:[%s584] sm:$0x3]
      %v587 = vperm.slane %v585, 0
      %v588 = vperm.slane %v585, 1
      %v589 = vrot.slane %v588, 4
      %v590 = vsel %vm430, %v587, %v589
      %591 = vrot.lane.b32.xlu0 %v590, 112
      %v592 = vpop.permute.xlu0 %591
      %v593 = vrot.slane %v592, 4
      %vm594 = vcmask 916480
      %v595 = vsel %vm594, %v593, %v592
      %v598 = vmul.f32 %v566, %v595
      %v599 = vmul.f32 %v567, %v593
      %s600 = scalar_lea.vmem %s5, 4
      %v601 = vld [vmem:[%s600] sm:$0xf]
      %604 = vst [vmem:[#allocation1] ss:$2 sm:$0xff] %v598
      %s605 = scalar_lea.vmem [#allocation1], 16
      %606 = vst [vmem:[%s605] ss:$2 sm:$0xff] %v599
      %v607 = vld.sshfl [vmem:[#allocation1] sm:$0xff pattern:$0x75316420]
      %v608 = vld.sshfl [vmem:[#allocation1 + $0x8] sm:$0xff pattern:$0x75316420]
      %v609 = vld.sshfl [vmem:[#allocation1 + $0x10] sm:$0xff pattern:$0x75316420]
      %610 = vrot.lane.b32.xlu0 %v607, 16
      %v611 = vpop.permute.xlu0 %610
      %612 = vrot.lane.b32.xlu0 %v608, 16
      %v613 = vpop.permute.xlu0 %612
      %614 = vrot.lane.b32.xlu0 %v609, 16
      %v615 = vpop.permute.xlu0 %614
      %vm616 = vcmask 130048
      %v617 = vsel %vm616, %v611, %v613
      %v618 = vsel %vm616, %v613, %v615
      %v620 = vsel %vm426, %v601, 0
      %v622 = vsel %vm430, %v617, 0
      %v624 = vsel %vm430, %v618, 0
      %626 = vmatpush.msra.mxu0 0.0
      %627 = vmatpush.msra.mxu0 0.0
      %628 = vmatpush.msra.mxu0 0.0
      %629 = vmatpush.msra.mxu0 0.0
      %630 = vmatpush.msra.mxu0 0.0
      %631 = vmatpush.msra.mxu0 0.0
      %632 = vmatpush.msra.mxu0 0.0
      %633 = vmatpush.msra.mxu0 0.0
      %634 = vmatpush.msra.mxu0 0.0
      %635 = vmatpush.msra.mxu0 0.0
      %636 = vmatpush.msra.mxu0 0.0
      %637 = vmatpush.msra.mxu0 0.0
      %638 = vmatpush.msra.mxu0 0.0
      %639 = vmatpush.msra.mxu0 0.0
      %640 = vmatpush.msra.mxu0 0.0
      %641 = vmatpush.msra.mxu0 %v622
      %642 = vmatmul.f32.gmra.mxu0 %v620
      %v643 = vpop.f32.mrf.mxu0
      %v644 = vadd.f32 0.0, %v643
      %645 = vdwg.mxu0
      %646 = vmatpush.msra.mxu0 0.0
      %647 = vmatpush.msra.mxu0 0.0
      %648 = vmatpush.msra.mxu0 0.0
      %649 = vmatpush.msra.mxu0 0.0
      %650 = vmatpush.msra.mxu0 0.0
      %651 = vmatpush.msra.mxu0 0.0
      %652 = vmatpush.msra.mxu0 0.0
      %653 = vmatpush.msra.mxu0 0.0
      %654 = vmatpush.msra.mxu0 0.0
      %655 = vmatpush.msra.mxu0 0.0
      %656 = vmatpush.msra.mxu0 0.0
      %657 = vmatpush.msra.mxu0 0.0
      %658 = vmatpush.msra.mxu0 0.0
      %659 = vmatpush.msra.mxu0 0.0
      %660 = vmatpush.msra.mxu0 0.0
      %661 = vmatpush.msra.mxu0 %v624
      %662 = vmatmul.f32.gmra.mxu0 %v620
      %v663 = vpop.f32.mrf.mxu0
      %v664 = vadd.f32 0.0, %v663
      %665 = vdwg.mxu0
      %668 = vst [vmem:[#allocation1] ss:$2 sm:$0xff] %v581
      %s669 = scalar_lea.vmem [#allocation1], 16
      %670 = vst [vmem:[%s669] ss:$2 sm:$0xff] %v582
      %v671 = vld.sshfl [vmem:[#allocation1] sm:$0xff pattern:$0x75316420]
      %v672 = vld.sshfl [vmem:[#allocation1 + $0x8] sm:$0xff pattern:$0x75316420]
      %v673 = vld.sshfl [vmem:[#allocation1 + $0x10] sm:$0xff pattern:$0x75316420]
      %674 = vrot.lane.b32.xlu0 %v671, 17
      %v675 = vpop.permute.xlu0 %674
      %676 = vrot.lane.b32.xlu0 %v672, 17
      %v677 = vpop.permute.xlu0 %676
      %678 = vrot.lane.b32.xlu0 %v673, 17
      %v679 = vpop.permute.xlu0 %678
      %vm680 = vcmask 138240
      %v681 = vsel %vm680, %v675, %v677
      %v682 = vsel %vm680, %v677, %v679
      %v684 = vsel %vm426, %v583, 0
      %v686 = vsel %vm430, %v681, 0
      %v688 = vsel %vm430, %v682, 0
      %690 = vmatpush.msra.mxu0 0.0
      %691 = vmatpush.msra.mxu0 0.0
      %692 = vmatpush.msra.mxu0 0.0
      %693 = vmatpush.msra.mxu0 0.0
      %694 = vmatpush.msra.mxu0 0.0
      %695 = vmatpush.msra.mxu0 0.0
      %696 = vmatpush.msra.mxu0 0.0
      %697 = vmatpush.msra.mxu0 0.0
      %698 = vmatpush.msra.mxu0 0.0
      %699 = vmatpush.msra.mxu0 0.0
      %700 = vmatpush.msra.mxu0 0.0
      %701 = vmatpush.msra.mxu0 0.0
      %702 = vmatpush.msra.mxu0 0.0
      %703 = vmatpush.msra.mxu0 0.0
      %704 = vmatpush.msra.mxu0 0.0
      %705 = vmatpush.msra.mxu0 %v686
      %706 = vmatmul.f32.gmra.mxu0 %v684
      %v707 = vpop.f32.mrf.mxu0
      %v708 = vadd.f32 %v644, %v707
      %709 = vdwg.mxu0
      %710 = vmatpush.msra.mxu0 0.0
      %711 = vmatpush.msra.mxu0 0.0
      %712 = vmatpush.msra.mxu0 0.0
      %713 = vmatpush.msra.mxu0 0.0
      %714 = vmatpush.msra.mxu0 0.0
      %715 = vmatpush.msra.mxu0 0.0
      %716 = vmatpush.msra.mxu0 0.0
      %717 = vmatpush.msra.mxu0 0.0
      %718 = vmatpush.msra.mxu0 0.0
      %719 = vmatpush.msra.mxu0 0.0
      %720 = vmatpush.msra.mxu0 0.0
      %721 = vmatpush.msra.mxu0 0.0
      %722 = vmatpush.msra.mxu0 0.0
      %723 = vmatpush.msra.mxu0 0.0
      %724 = vmatpush.msra.mxu0 0.0
      %725 = vmatpush.msra.mxu0 %v688
      %726 = vmatmul.f32.gmra.mxu0 %v684
      %v727 = vpop.f32.mrf.mxu0
      %v728 = vadd.f32 %v664, %v727
      %729 = vdwg.mxu0
      %v730 = vld [vmem:[#allocation2] sm:$0xff]
      %v731 = vld [vmem:[#allocation2 + $0x8] sm:$0xf]
      %s732 = scalar_lea.vmem %s11, 4
      %v733 = vld [vmem:[%s732] sm:$0x3]
      %v735 = vperm.slane %v733, 0
      %v736 = vperm.slane %v733, 1
      %v737 = vrot.slane %v736, 4
      %v738 = vsel %vm430, %v735, %v737
      %739 = vrot.lane.b32.xlu0 %v738, 113
      %v740 = vpop.permute.xlu0 %739
      %v741 = vrot.slane %v740, 4
      %vm742 = vcmask 924672
      %v743 = vsel %vm742, %v741, %v740
      %v746 = vmul.f32 %v730, %v743
      %v747 = vmul.f32 %v731, %v741
      %s748 = scalar_lea.vmem %s5, 8
      %v749 = vld [vmem:[%s748] sm:$0xf]
      %752 = vst [vmem:[#allocation1] ss:$2 sm:$0xff] %v746
      %s753 = scalar_lea.vmem [#allocation1], 16
      %754 = vst [vmem:[%s753] ss:$2 sm:$0xff] %v747
      %v755 = vld.sshfl [vmem:[#allocation1] sm:$0xff pattern:$0x75316420]
      %v756 = vld.sshfl [vmem:[#allocation1 + $0x8] sm:$0xff pattern:$0x75316420]
      %v757 = vld.sshfl [vmem:[#allocation1 + $0x10] sm:$0xff pattern:$0x75316420]
      %758 = vrot.lane.b32.xlu0 %v755, 15
      %v759 = vpop.permute.xlu0 %758
      %760 = vrot.lane.b32.xlu0 %v756, 15
      %v761 = vpop.permute.xlu0 %760
      %762 = vrot.lane.b32.xlu0 %v757, 15
      %v763 = vpop.permute.xlu0 %762
      %vm764 = vcmask 121856
      %v765 = vsel %vm764, %v759, %v761
      %v766 = vsel %vm764, %v761, %v763
      %v768 = vsel %vm426, %v749, 0
      %v770 = vsel %vm430, %v765, 0
      %v772 = vsel %vm430, %v766, 0
      %774 = vmatpush.msra.mxu0 0.0
      %775 = vmatpush.msra.mxu0 0.0
      %776 = vmatpush.msra.mxu0 0.0
      %777 = vmatpush.msra.mxu0 0.0
      %778 = vmatpush.msra.mxu0 0.0
      %779 = vmatpush.msra.mxu0 0.0
      %780 = vmatpush.msra.mxu0 0.0
      %781 = vmatpush.msra.mxu0 0.0
      %782 = vmatpush.msra.mxu0 0.0
      %783 = vmatpush.msra.mxu0 0.0
      %784 = vmatpush.msra.mxu0 0.0
      %785 = vmatpush.msra.mxu0 0.0
      %786 = vmatpush.msra.mxu0 0.0
      %787 = vmatpush.msra.mxu0 0.0
      %788 = vmatpush.msra.mxu0 0.0
      %789 = vmatpush.msra.mxu0 %v770
      %790 = vmatmul.f32.gmra.mxu0 %v768
      %v791 = vpop.f32.mrf.mxu0
      %v792 = vadd.f32 0.0, %v791
      %793 = vdwg.mxu0
      %794 = vmatpush.msra.mxu0 0.0
      %795 = vmatpush.msra.mxu0 0.0
      %796 = vmatpush.msra.mxu0 0.0
      %797 = vmatpush.msra.mxu0 0.0
      %798 = vmatpush.msra.mxu0 0.0
      %799 = vmatpush.msra.mxu0 0.0
      %800 = vmatpush.msra.mxu0 0.0
      %801 = vmatpush.msra.mxu0 0.0
      %802 = vmatpush.msra.mxu0 0.0
      %803 = vmatpush.msra.mxu0 0.0
      %804 = vmatpush.msra.mxu0 0.0
      %805 = vmatpush.msra.mxu0 0.0
      %806 = vmatpush.msra.mxu0 0.0
      %807 = vmatpush.msra.mxu0 0.0
      %808 = vmatpush.msra.mxu0 0.0
      %809 = vmatpush.msra.mxu0 %v772
      %810 = vmatmul.f32.gmra.mxu0 %v768
      %v811 = vpop.f32.mrf.mxu0
      %v812 = vadd.f32 0.0, %v811
      %813 = vdwg.mxu0
      %v814 = vadd.f32 %v708, %v792
      %v815 = vadd.f32 %v728, %v812
      %v816 = vld [vmem:[#allocation2] sm:$0xff]
      %v817 = vld [vmem:[#allocation2 + $0x8] sm:$0xf]
      %818 = vrot.lane.b32.xlu0 %v573, 127
      %v819 = vpop.permute.xlu0 %818
      %v820 = vrot.slane %v819, 4
      %vm821 = vcmask 1039360
      %v822 = vsel %vm821, %v820, %v819
      %v825 = vmul.f32 %v816, %v822
      %v826 = vmul.f32 %v817, %v820
      %s827 = scalar_lea.vmem %s5, 12
      %v828 = vld [vmem:[%s827] sm:$0xf]
      %831 = vst [vmem:[#allocation1] ss:$2 sm:$0xff] %v825
      %s832 = scalar_lea.vmem [#allocation1], 16
      %833 = vst [vmem:[%s832] ss:$2 sm:$0xff] %v826
      %v834 = vld.sshfl [vmem:[#allocation1] sm:$0xff pattern:$0x75316420]
      %v835 = vld.sshfl [vmem:[#allocation1 + $0x8] sm:$0xff pattern:$0x75316420]
      %v836 = vld.sshfl [vmem:[#allocation1 + $0x10] sm:$0xff pattern:$0x75316420]
      %837 = vrot.lane.b32.xlu0 %v834, 1
      %v838 = vpop.permute.xlu0 %837
      %839 = vrot.lane.b32.xlu0 %v835, 1
      %v840 = vpop.permute.xlu0 %839
      %841 = vrot.lane.b32.xlu0 %v836, 1
      %v842 = vpop.permute.xlu0 %841
      %vm843 = vcmask 7168
      %v844 = vsel %vm843, %v838, %v840
      %v845 = vsel %vm843, %v840, %v842
      %v847 = vsel %vm426, %v828, 0
      %v849 = vsel %vm430, %v844, 0
      %v851 = vsel %vm430, %v845, 0
      %853 = vmatpush.msra.mxu0 0.0
      %854 = vmatpush.msra.mxu0 0.0
      %855 = vmatpush.msra.mxu0 0.0
      %856 = vmatpush.msra.mxu0 0.0
      %857 = vmatpush.msra.mxu0 0.0
      %858 = vmatpush.msra.mxu0 0.0
      %859 = vmatpush.msra.mxu0 0.0
      %860 = vmatpush.msra.mxu0 0.0
      %861 = vmatpush.msra.mxu0 0.0
      %862 = vmatpush.msra.mxu0 0.0
      %863 = vmatpush.msra.mxu0 0.0
      %864 = vmatpush.msra.mxu0 0.0
      %865 = vmatpush.msra.mxu0 0.0
      %866 = vmatpush.msra.mxu0 0.0
      %867 = vmatpush.msra.mxu0 0.0
      %868 = vmatpush.msra.mxu0 %v849
      %869 = vmatmul.f32.gmra.mxu0 %v847
      %v870 = vpop.f32.mrf.mxu0
      %v871 = vadd.f32 0.0, %v870
      %872 = vdwg.mxu0
      %873 = vmatpush.msra.mxu0 0.0
      %874 = vmatpush.msra.mxu0 0.0
      %875 = vmatpush.msra.mxu0 0.0
      %876 = vmatpush.msra.mxu0 0.0
      %877 = vmatpush.msra.mxu0 0.0
      %878 = vmatpush.msra.mxu0 0.0
      %879 = vmatpush.msra.mxu0 0.0
      %880 = vmatpush.msra.mxu0 0.0
      %881 = vmatpush.msra.mxu0 0.0
      %882 = vmatpush.msra.mxu0 0.0
      %883 = vmatpush.msra.mxu0 0.0
      %884 = vmatpush.msra.mxu0 0.0
      %885 = vmatpush.msra.mxu0 0.0
      %886 = vmatpush.msra.mxu0 0.0
      %887 = vmatpush.msra.mxu0 0.0
      %888 = vmatpush.msra.mxu0 %v851
      %889 = vmatmul.f32.gmra.mxu0 %v847
      %v890 = vpop.f32.mrf.mxu0
      %v891 = vadd.f32 0.0, %v890
      %892 = vdwg.mxu0
      %v893 = vadd.f32 %v814, %v871
      %v894 = vadd.f32 %v815, %v891
      %v895 = vld [vmem:[#allocation2 + $0x4] sm:$0xff]
      %v897 = vmul.f32 %v895, %v590
      %s898 = scalar_lea.vmem %s5, 16
      %v899 = vld [vmem:[%s898] sm:$0xf]
      %901 = vst [vmem:[#allocation1] ss:$2 sm:$0xff] %v897
      %v902 = vld.sshfl [vmem:[#allocation1] sm:$0xff pattern:$0x75316420]
      %v903 = vld.sshfl [vmem:[#allocation1 + $0x8] sm:$0xff pattern:$0x75316420]
      %v905 = vsel %vm426, %v899, 0
      %v907 = vsel %vm430, %v902, 0
      %v909 = vsel %vm430, %v903, 0
      %911 = vmatpush.msra.mxu0 0.0
      %912 = vmatpush.msra.mxu0 0.0
      %913 = vmatpush.msra.mxu0 0.0
      %914 = vmatpush.msra.mxu0 0.0
      %915 = vmatpush.msra.mxu0 0.0
      %916 = vmatpush.msra.mxu0 0.0
      %917 = vmatpush.msra.mxu0 0.0
      %918 = vmatpush.msra.mxu0 0.0
      %919 = vmatpush.msra.mxu0 0.0
      %920 = vmatpush.msra.mxu0 0.0
      %921 = vmatpush.msra.mxu0 0.0
      %922 = vmatpush.msra.mxu0 0.0
      %923 = vmatpush.msra.mxu0 0.0
      %924 = vmatpush.msra.mxu0 0.0
      %925 = vmatpush.msra.mxu0 0.0
      %926 = vmatpush.msra.mxu0 %v907
      %927 = vmatmul.f32.gmra.mxu0 %v905
      %v928 = vpop.f32.mrf.mxu0
      %v929 = vadd.f32 0.0, %v928
      %930 = vdwg.mxu0
      %931 = vmatpush.msra.mxu0 0.0
      %932 = vmatpush.msra.mxu0 0.0
      %933 = vmatpush.msra.mxu0 0.0
      %934 = vmatpush.msra.mxu0 0.0
      %935 = vmatpush.msra.mxu0 0.0
      %936 = vmatpush.msra.mxu0 0.0
      %937 = vmatpush.msra.mxu0 0.0
      %938 = vmatpush.msra.mxu0 0.0
      %939 = vmatpush.msra.mxu0 0.0
      %940 = vmatpush.msra.mxu0 0.0
      %941 = vmatpush.msra.mxu0 0.0
      %942 = vmatpush.msra.mxu0 0.0
      %943 = vmatpush.msra.mxu0 0.0
      %944 = vmatpush.msra.mxu0 0.0
      %945 = vmatpush.msra.mxu0 0.0
      %946 = vmatpush.msra.mxu0 %v909
      %947 = vmatmul.f32.gmra.mxu0 %v905
      %v948 = vpop.f32.mrf.mxu0
      %v949 = vadd.f32 0.0, %v948
      %950 = vdwg.mxu0
      %v951 = vadd.f32 %v893, %v929
      %v952 = vadd.f32 %v894, %v949
      %v953 = vld [vmem:[#allocation2 + $0x4] sm:$0xff]
      %v954 = vld [vmem:[#allocation2 + $0xc] sm:$0xf]
      %955 = vrot.lane.b32.xlu0 %v738, 1
      %v956 = vpop.permute.xlu0 %955
      %v957 = vrot.slane %v956, 4
      %v958 = vsel %vm843, %v957, %v956
      %v961 = vmul.f32 %v953, %v958
      %v962 = vmul.f32 %v954, %v957
      %s963 = scalar_lea.vmem %s5, 20
      %v964 = vld [vmem:[%s963] sm:$0xf]
      %967 = vst [vmem:[#allocation1] ss:$2 sm:$0xff] %v961
      %s968 = scalar_lea.vmem [#allocation1], 16
      %969 = vst [vmem:[%s968] ss:$2 sm:$0xff] %v962
      %v970 = vld.sshfl [vmem:[#allocation1] sm:$0xff pattern:$0x75316420]
      %v971 = vld.sshfl [vmem:[#allocation1 + $0x8] sm:$0xff pattern:$0x75316420]
      %v972 = vld.sshfl [vmem:[#allocation1 + $0x10] sm:$0xff pattern:$0x75316420]
      %973 = vrot.lane.b32.xlu0 %v970, 127
      %v974 = vpop.permute.xlu0 %973
      %975 = vrot.lane.b32.xlu0 %v971, 127
      %v976 = vpop.permute.xlu0 %975
      %977 = vrot.lane.b32.xlu0 %v972, 127
      %v978 = vpop.permute.xlu0 %977
      %v979 = vsel %vm821, %v974, %v976
      %v980 = vsel %vm821, %v976, %v978
      %v982 = vsel %vm426, %v964, 0
      %v984 = vsel %vm430, %v979, 0
      %v986 = vsel %vm430, %v980, 0
      %988 = vmatpush.msra.mxu0 0.0
      %989 = vmatpush.msra.mxu0 0.0
      %990 = vmatpush.msra.mxu0 0.0
      %991 = vmatpush.msra.mxu0 0.0
      %992 = vmatpush.msra.mxu0 0.0
      %993 = vmatpush.msra.mxu0 0.0
      %994 = vmatpush.msra.mxu0 0.0
      %995 = vmatpush.msra.mxu0 0.0
      %996 = vmatpush.msra.mxu0 0.0
      %997 = vmatpush.msra.mxu0 0.0
      %998 = vmatpush.msra.mxu0 0.0
      %999 = vmatpush.msra.mxu0 0.0
      %1000 = vmatpush.msra.mxu0 0.0
      %1001 = vmatpush.msra.mxu0 0.0
      %1002 = vmatpush.msra.mxu0 0.0
      %1003 = vmatpush.msra.mxu0 %v984
      %1004 = vmatmul.f32.gmra.mxu0 %v982
      %v1005 = vpop.f32.mrf.mxu0
      %v1006 = vadd.f32 0.0, %v1005
      %1007 = vdwg.mxu0
      %1008 = vmatpush.msra.mxu0 0.0
      %1009 = vmatpush.msra.mxu0 0.0
      %1010 = vmatpush.msra.mxu0 0.0
      %1011 = vmatpush.msra.mxu0 0.0
      %1012 = vmatpush.msra.mxu0 0.0
      %1013 = vmatpush.msra.mxu0 0.0
      %1014 = vmatpush.msra.mxu0 0.0
      %1015 = vmatpush.msra.mxu0 0.0
      %1016 = vmatpush.msra.mxu0 0.0
      %1017 = vmatpush.msra.mxu0 0.0
      %1018 = vmatpush.msra.mxu0 0.0
      %1019 = vmatpush.msra.mxu0 0.0
      %1020 = vmatpush.msra.mxu0 0.0
      %1021 = vmatpush.msra.mxu0 0.0
      %1022 = vmatpush.msra.mxu0 0.0
      %1023 = vmatpush.msra.mxu0 %v986
      %1024 = vmatmul.f32.gmra.mxu0 %v982
      %v1025 = vpop.f32.mrf.mxu0
      %v1026 = vadd.f32 0.0, %v1025
      %1027 = vdwg.mxu0
      %v1028 = vadd.f32 %v951, %v1006
      %v1029 = vadd.f32 %v952, %v1026
      %v1030 = vld [vmem:[#allocation2 + $0x4] sm:$0xff]
      %v1031 = vld [vmem:[#allocation2 + $0xc] sm:$0xf]
      %1032 = vrot.lane.b32.xlu0 %v573, 15
      %v1033 = vpop.permute.xlu0 %1032
      %v1034 = vrot.slane %v1033, 4
      %v1035 = vsel %vm764, %v1034, %v1033
      %v1038 = vmul.f32 %v1030, %v1035
      %v1039 = vmul.f32 %v1031, %v1034
      %s1040 = scalar_lea.vmem %s5, 24
      %v1041 = vld [vmem:[%s1040] sm:$0xf]
      %1044 = vst [vmem:[#allocation1] ss:$2 sm:$0xff] %v1038
      %s1045 = scalar_lea.vmem [#allocation1], 16
      %1046 = vst [vmem:[%s1045] ss:$2 sm:$0xff] %v1039
      %v1047 = vld.sshfl [vmem:[#allocation1] sm:$0xff pattern:$0x75316420]
      %v1048 = vld.sshfl [vmem:[#allocation1 + $0x8] sm:$0xff pattern:$0x75316420]
      %v1049 = vld.sshfl [vmem:[#allocation1 + $0x10] sm:$0xff pattern:$0x75316420]
      %1050 = vrot.lane.b32.xlu0 %v1047, 113
      %v1051 = vpop.permute.xlu0 %1050
      %1052 = vrot.lane.b32.xlu0 %v1048, 113
      %v1053 = vpop.permute.xlu0 %1052
      %1054 = vrot.lane.b32.xlu0 %v1049, 113
      %v1055 = vpop.permute.xlu0 %1054
      %v1056 = vsel %vm742, %v1051, %v1053
      %v1057 = vsel %vm742, %v1053, %v1055
      %v1059 = vsel %vm426, %v1041, 0
      %v1061 = vsel %vm430, %v1056, 0
      %v1063 = vsel %vm430, %v1057, 0
      %1065 = vmatpush.msra.mxu0 0.0
      %1066 = vmatpush.msra.mxu0 0.0
      %1067 = vmatpush.msra.mxu0 0.0
      %1068 = vmatpush.msra.mxu0 0.0
      %1069 = vmatpush.msra.mxu0 0.0
      %1070 = vmatpush.msra.mxu0 0.0
      %1071 = vmatpush.msra.mxu0 0.0
      %1072 = vmatpush.msra.mxu0 0.0
      %1073 = vmatpush.msra.mxu0 0.0
      %1074 = vmatpush.msra.mxu0 0.0
      %1075 = vmatpush.msra.mxu0 0.0
      %1076 = vmatpush.msra.mxu0 0.0
      %1077 = vmatpush.msra.mxu0 0.0
      %1078 = vmatpush.msra.mxu0 0.0
      %1079 = vmatpush.msra.mxu0 0.0
      %1080 = vmatpush.msra.mxu0 %v1061
      %1081 = vmatmul.f32.gmra.mxu0 %v1059
      %v1082 = vpop.f32.mrf.mxu0
      %v1083 = vadd.f32 0.0, %v1082
      %1084 = vdwg.mxu0
      %1085 = vmatpush.msra.mxu0 0.0
      %1086 = vmatpush.msra.mxu0 0.0
      %1087 = vmatpush.msra.mxu0 0.0
      %1088 = vmatpush.msra.mxu0 0.0
      %1089 = vmatpush.msra.mxu0 0.0
      %1090 = vmatpush.msra.mxu0 0.0
      %1091 = vmatpush.msra.mxu0 0.0
      %1092 = vmatpush.msra.mxu0 0.0
      %1093 = vmatpush.msra.mxu0 0.0
      %1094 = vmatpush.msra.mxu0 0.0
      %1095 = vmatpush.msra.mxu0 0.0
      %1096 = vmatpush.msra.mxu0 0.0
      %1097 = vmatpush.msra.mxu0 0.0
      %1098 = vmatpush.msra.mxu0 0.0
      %1099 = vmatpush.msra.mxu0 0.0
      %1100 = vmatpush.msra.mxu0 %v1063
      %1101 = vmatmul.f32.gmra.mxu0 %v1059
      %v1102 = vpop.f32.mrf.mxu0
      %v1103 = vadd.f32 0.0, %v1102
      %1104 = vdwg.mxu0
      %v1105 = vadd.f32 %v1028, %v1083
      %v1106 = vadd.f32 %v1029, %v1103
      %v1107 = vld [vmem:[#allocation2 + $0x4] sm:$0xff]
      %v1108 = vld [vmem:[#allocation2 + $0xc] sm:$0xf]
      %1109 = vrot.lane.b32.xlu0 %v590, 16
      %v1110 = vpop.permute.xlu0 %1109
      %v1111 = vrot.slane %v1110, 4
      %v1112 = vsel %vm616, %v1111, %v1110
      %v1115 = vmul.f32 %v1107, %v1112
      %v1116 = vmul.f32 %v1108, %v1111
      %s1117 = scalar_lea.vmem %s5, 28
      %v1118 = vld [vmem:[%s1117] sm:$0xf]
      %1121 = vst [vmem:[#allocation1] ss:$2 sm:$0xff] %v1115
      %s1122 = scalar_lea.vmem [#allocation1], 16
      %1123 = vst [vmem:[%s1122] ss:$2 sm:$0xff] %v1116
      %v1124 = vld.sshfl [vmem:[#allocation1] sm:$0xff pattern:$0x75316420]
      %v1125 = vld.sshfl [vmem:[#allocation1 + $0x8] sm:$0xff pattern:$0x75316420]
      %v1126 = vld.sshfl [vmem:[#allocation1 + $0x10] sm:$0xff pattern:$0x75316420]
      %1127 = vrot.lane.b32.xlu0 %v1124, 112
      %v1128 = vpop.permute.xlu0 %1127
      %1129 = vrot.lane.b32.xlu0 %v1125, 112
      %v1130 = vpop.permute.xlu0 %1129
      %1131 = vrot.lane.b32.xlu0 %v1126, 112
      %v1132 = vpop.permute.xlu0 %1131
      %v1133 = vsel %vm594, %v1128, %v1130
      %v1134 = vsel %vm594, %v1130, %v1132
      %v1136 = vsel %vm426, %v1118, 0
      %v1138 = vsel %vm430, %v1133, 0
      %v1140 = vsel %vm430, %v1134, 0
      %1142 = vmatpush.msra.mxu0 0.0
      %1143 = vmatpush.msra.mxu0 0.0
      %1144 = vmatpush.msra.mxu0 0.0
      %1145 = vmatpush.msra.mxu0 0.0
      %1146 = vmatpush.msra.mxu0 0.0
      %1147 = vmatpush.msra.mxu0 0.0
      %1148 = vmatpush.msra.mxu0 0.0
      %1149 = vmatpush.msra.mxu0 0.0
      %1150 = vmatpush.msra.mxu0 0.0
      %1151 = vmatpush.msra.mxu0 0.0
      %1152 = vmatpush.msra.mxu0 0.0
      %1153 = vmatpush.msra.mxu0 0.0
      %1154 = vmatpush.msra.mxu0 0.0
      %1155 = vmatpush.msra.mxu0 0.0
      %1156 = vmatpush.msra.mxu0 0.0
      %1157 = vmatpush.msra.mxu0 %v1138
      %1158 = vmatmul.f32.gmra.mxu0 %v1136
      %v1159 = vpop.f32.mrf.mxu0
      %v1160 = vadd.f32 0.0, %v1159
      %1161 = vdwg.mxu0
      %1162 = vmatpush.msra.mxu0 0.0
      %1163 = vmatpush.msra.mxu0 0.0
      %1164 = vmatpush.msra.mxu0 0.0
      %1165 = vmatpush.msra.mxu0 0.0
      %1166 = vmatpush.msra.mxu0 0.0
      %1167 = vmatpush.msra.mxu0 0.0
      %1168 = vmatpush.msra.mxu0 0.0
      %1169 = vmatpush.msra.mxu0 0.0
      %1170 = vmatpush.msra.mxu0 0.0
      %1171 = vmatpush.msra.mxu0 0.0
      %1172 = vmatpush.msra.mxu0 0.0
      %1173 = vmatpush.msra.mxu0 0.0
      %1174 = vmatpush.msra.mxu0 0.0
      %1175 = vmatpush.msra.mxu0 0.0
      %1176 = vmatpush.msra.mxu0 0.0
      %1177 = vmatpush.msra.mxu0 %v1140
      %1178 = vmatmul.f32.gmra.mxu0 %v1136
      %v1179 = vpop.f32.mrf.mxu0
      %v1180 = vadd.f32 0.0, %v1179
      %1181 = vdwg.mxu0
      %v1182 = vadd.f32 %v1105, %v1160
      %v1183 = vadd.f32 %v1106, %v1180
      %v1184 = vld [vmem:[#allocation2 + $0x4] sm:$0xff]
      %v1185 = vld [vmem:[#allocation2 + $0xc] sm:$0xf]
      %1186 = vrot.lane.b32.xlu0 %v738, 17
      %v1187 = vpop.permute.xlu0 %1186
      %v1188 = vrot.slane %v1187, 4
      %v1189 = vsel %vm680, %v1188, %v1187
      %v1192 = vmul.f32 %v1184, %v1189
      %v1193 = vmul.f32 %v1185, %v1188
      %s1194 = scalar_lea.vmem %s5, 32
      %v1195 = vld [vmem:[%s1194] sm:$0xf]
      %1198 = vst [vmem:[#allocation1] ss:$2 sm:$0xff] %v1192
      %s1199 = scalar_lea.vmem [#allocation1], 16
      %1200 = vst [vmem:[%s1199] ss:$2 sm:$0xff] %v1193
      %v1201 = vld.sshfl [vmem:[#allocation1] sm:$0xff pattern:$0x75316420]
      %v1202 = vld.sshfl [vmem:[#allocation1 + $0x8] sm:$0xff pattern:$0x75316420]
      %v1203 = vld.sshfl [vmem:[#allocation1 + $0x10] sm:$0xff pattern:$0x75316420]
      %1204 = vrot.lane.b32.xlu0 %v1201, 111
      %v1205 = vpop.permute.xlu0 %1204
      %1206 = vrot.lane.b32.xlu0 %v1202, 111
      %v1207 = vpop.permute.xlu0 %1206
      %1208 = vrot.lane.b32.xlu0 %v1203, 111
      %v1209 = vpop.permute.xlu0 %1208
      %v1210 = vsel %vm577, %v1205, %v1207
      %v1211 = vsel %vm577, %v1207, %v1209
      %v1213 = vsel %vm426, %v1195, 0
      %v1215 = vsel %vm430, %v1210, 0
      %v1217 = vsel %vm430, %v1211, 0
      %1219 = vmatpush.msra.mxu0 0.0
      %1220 = vmatpush.msra.mxu0 0.0
      %1221 = vmatpush.msra.mxu0 0.0
      %1222 = vmatpush.msra.mxu0 0.0
      %1223 = vmatpush.msra.mxu0 0.0
      %1224 = vmatpush.msra.mxu0 0.0
      %1225 = vmatpush.msra.mxu0 0.0
      %1226 = vmatpush.msra.mxu0 0.0
      %1227 = vmatpush.msra.mxu0 0.0
      %1228 = vmatpush.msra.mxu0 0.0
      %1229 = vmatpush.msra.mxu0 0.0
      %1230 = vmatpush.msra.mxu0 0.0
      %1231 = vmatpush.msra.mxu0 0.0
      %1232 = vmatpush.msra.mxu0 0.0
      %1233 = vmatpush.msra.mxu0 0.0
      %1234 = vmatpush.msra.mxu0 %v1215
      %1235 = vmatmul.f32.gmra.mxu0 %v1213
      %v1236 = vpop.f32.mrf.mxu0
      %v1237 = vadd.f32 0.0, %v1236
      %1238 = vdwg.mxu0
      %1239 = vmatpush.msra.mxu0 0.0
      %1240 = vmatpush.msra.mxu0 0.0
      %1241 = vmatpush.msra.mxu0 0.0
      %1242 = vmatpush.msra.mxu0 0.0
      %1243 = vmatpush.msra.mxu0 0.0
      %1244 = vmatpush.msra.mxu0 0.0
      %1245 = vmatpush.msra.mxu0 0.0
      %1246 = vmatpush.msra.mxu0 0.0
      %1247 = vmatpush.msra.mxu0 0.0
      %1248 = vmatpush.msra.mxu0 0.0
      %1249 = vmatpush.msra.mxu0 0.0
      %1250 = vmatpush.msra.mxu0 0.0
      %1251 = vmatpush.msra.mxu0 0.0
      %1252 = vmatpush.msra.mxu0 0.0
      %1253 = vmatpush.msra.mxu0 0.0
      %1254 = vmatpush.msra.mxu0 %v1217
      %1255 = vmatmul.f32.gmra.mxu0 %v1213
      %v1256 = vpop.f32.mrf.mxu0
      %v1257 = vadd.f32 0.0, %v1256
      %1258 = vdwg.mxu0
      %v1259 = vadd.f32 %v1182, %v1237
      %v1260 = vadd.f32 %v1183, %v1257
      %v1261 = vld [vmem:[%s6] sm:$0xf]
      %1263 = vset.pattern.permute.xlu0 0
      %1264 = vperm.xlu0 %1263, %v1261
      %v1265 = vpop.permute.xlu0 %1264
      %v1267 = vadd.f32 %v1259, %v1265
      %v1268 = vadd.f32 %v1260, %v1265
      %v1269 = vmax.f32 %v1267, 0.0
      %v1270 = vmax.f32 %v1268, 0.0
      %v1271 = vld [vmem:[%s7] sm:$0xff]
      %v1272 = vld [vmem:[%s8] sm:$0xff]
      %1274 = vset.pattern.permute.xlu0 0
      %1275 = vperm.xlu0 %1274, %v1272
      %v1276 = vpop.permute.xlu0 %1275
      %v1279 = vsel %vm426, %v1271, 0
      %v1282 = vsel %vm430, %v1269, 0
      %v1285 = vsel %vm430, %v1270, 0
      %1287 = vmatpush.msra.mxu0 0.0
      %1288 = vmatpush.msra.mxu0 0.0
      %1289 = vmatpush.msra.mxu0 0.0
      %1290 = vmatpush.msra.mxu0 0.0
      %1291 = vmatpush.msra.mxu0 0.0
      %1292 = vmatpush.msra.mxu0 0.0
      %1293 = vmatpush.msra.mxu0 0.0
      %1294 = vmatpush.msra.mxu0 0.0
      %1295 = vmatpush.msra.mxu0 0.0
      %1296 = vmatpush.msra.mxu0 0.0
      %1297 = vmatpush.msra.mxu0 0.0
      %1298 = vmatpush.msra.mxu0 0.0
      %1299 = vmatpush.msra.mxu0 0.0
      %1300 = vmatpush.msra.mxu0 0.0
      %1301 = vmatpush.msra.mxu0 0.0
      %1302 = vmatpush.msra.mxu0 %v1282
      %1303 = vmatmul.f32.gmra.mxu0 %v1279
      %v1304 = vpop.f32.mrf.mxu0
      %v1305 = vadd.f32 %v1276, %v1304
      %1306 = vdwg.mxu0
      %1307 = vmatpush.msra.mxu0 0.0
      %1308 = vmatpush.msra.mxu0 0.0
      %1309 = vmatpush.msra.mxu0 0.0
      %1310 = vmatpush.msra.mxu0 0.0
      %1311 = vmatpush.msra.mxu0 0.0
      %1312 = vmatpush.msra.mxu0 0.0
      %1313 = vmatpush.msra.mxu0 0.0
      %1314 = vmatpush.msra.mxu0 0.0
      %1315 = vmatpush.msra.mxu0 0.0
      %1316 = vmatpush.msra.mxu0 0.0
      %1317 = vmatpush.msra.mxu0 0.0
      %1318 = vmatpush.msra.mxu0 0.0
      %1319 = vmatpush.msra.mxu0 0.0
      %1320 = vmatpush.msra.mxu0 0.0
      %1321 = vmatpush.msra.mxu0 0.0
      %1322 = vmatpush.msra.mxu0 %v1285
      %1323 = vmatmul.f32.gmra.mxu0 %v1279
      %v1324 = vpop.f32.mrf.mxu0
      %v1325 = vadd.f32 %v1276, %v1324
      %1326 = vdwg.mxu0
      %v1327 = vadd.f32 %v1305, %v453
      %v1328 = vadd.f32 %v1325, %v473
      %1329 = vst [vmem:[%s413] sm:$0xff] %v1327
      %1330 = vst [vmem:[%s413 + $0x8] sm:$0xff] %v1328
      %p1331 = scmp.lt.s32.totalorder %s23, 1
      %s1332 = scalar_select %p1331, %s23, 1
      %s1333 = smul.addr %s1332, 2
      %s1334 = smul.addr %s1333, 8
      %s1335 = scalar_lea.vmem %s12, %s1334
      // Predicated region
      $region69: #{residual_forward.1} parent=67 // pred_check
        %p1336 = pneg %p298
      $region70: #{residual_forward.1} parent=67 // pred_check_branch
        %1338 = sbr.rel (%p1336) target = $region72
      $region71: #{residual_forward.1} parent=67 // pred_region
        _
      $region72: #{residual_forward.1} parent=67 // pred_fallthru
        _
    $region68: #{residual_forward.1} parent=5 // pred_fallthru
      _
    %p1339 = scmp.le.s32.totalorder 2, %s18
    // Predicated region
    $region73: #{residual_forward.1} parent=5 // pred_check
      %p1340 = pneg %p1339
    $region74: #{residual_forward.1} parent=5 // pred_check_branch
      %1342 = sbr.rel (%p1340) target = $region76
    $region75: #{residual_forward.1} parent=5 // pred_region
      %s1343 = ssub.s32 %s18, 2
      // Predicated region
      $region77: #{residual_forward.1} parent=75 // pred_check
        %p1344 = pneg %p304
      $region78: #{residual_forward.1} parent=75 // pred_check_branch
        %1346 = sbr.rel (%p1344) target = $region80
      $region79: #{residual_forward.1} parent=75 // pred_region
        %p1347 = scmp.lt.s32.totalorder %s24, 1
        %s1348 = scalar_select %p1347, %s24, 1
        %s1349 = smul.addr %s1348, 2
        %s1350 = smul.addr %s1349, 8
        %s1351 = scalar_lea.vmem %s12, %s1350
      $region80: #{residual_forward.1} parent=75 // pred_fallthru
        _
    $region76: #{residual_forward.1} parent=5 // pred_fallthru
      _
  $region6: #{residual_forward.1} parent=0 // loop_footer
    %s22 = sadd.s32 1, %s18
  $region7: #{residual_forward.1} parent=0 // loop_footer_branch
    %17 = sbr.rel target = $region3
  $region8: #{residual_forward.1} parent=0 // loop_exit
    _

</llo_original>
